<compile_context>
chip_gen: v7x
topology: tpu7x:2x2x1
jax: 0.10.0
libtpu: 0.0.40
codegen_flags: <defaults>
</compile_context>

<pallas_src>
import functools

import jax
import jax.numpy as jnp
from jax.experimental import pallas as pl
from jax.experimental.pallas import tpu as pltpu

SELU_ALPHA = 1.6732632423543772
SELU_SCALE = 1.0507009873554805
BN_EPS = 1e-5


def _selu(x):
    # exp(x) - 1 (instead of expm1) keeps the Mosaic lowering on the plain EUP
    # exp path; absolute error ~1e-7 at f32, well inside the 1e-4 tolerance.
    return SELU_SCALE * jnp.where(x > 0, x, SELU_ALPHA * (jnp.exp(x) - 1.0))


# ---------------------------------------------------------------------------
# Fused C2F Pallas kernel (one batch element per grid step)
# ---------------------------------------------------------------------------

def _c2f_fused_kernel(x_ref, w1_ref, b1_ref, wc_ref, bc_ref, w2_ref, b2_ref,
                      o_ref, *, H, W, hidden, num_blocks, shortcut_add):
    HW = H * W
    x = x_ref[...]                                        # (Cin, HW)

    # ---- cv1 (1x1 conv + folded BN + SELU): lane-dense matmul -------------
    y = jnp.dot(w1_ref[...], x, preferred_element_type=jnp.float32)
    y = _selu(y + b1_ref[...])
    y1 = y[:hidden, :]                                    # chunk(2, dim=C)
    y2 = y[hidden:, :]

    # ---- 3x3 halo shifts/masks, hoisted: built ONCE, reused by every conv --
    # (1, HW) masks broadcast across channels inside jnp.where; no per-call
    # (hidden, HW) iota / compares.
    pos = jax.lax.broadcasted_iota(jnp.int32, (1, HW), 1)
    col = (pos & (W - 1)) if (W & (W - 1)) == 0 else (pos % W)
    tap_shift, tap_mask = [], []
    for dy in range(3):
        for dx in range(3):
            ry, rx = dy - 1, dx - 1
            off = ry * W + rx
            tap_shift.append((-off) % HW)
            conds = []
            if ry < 0:
                conds.append(pos >= (-ry) * W)            # row + ry >= 0
            if ry > 0:
                conds.append(pos < (H - ry) * W)          # row + ry < H
            if rx < 0:
                conds.append(col >= -rx)                  # col + rx >= 0
            if rx > 0:
                conds.append(col < W - rx)                # col + rx < W
            mask = None
            if conds:
                mask = conds[0]
                for c in conds[1:]:
                    mask = mask & c
            tap_mask.append(mask)

    def conv3x3(inp, idx):
        # Per-tap accumulation: 9 small (h,h)@(h,HW) MXU dots.  Never builds
        # the (9*Cin, HW) im2col slab (no sublane-misaligned concat, no big
        # live VMEM slab).  Halo zero-padding via hoisted lane rolls + masks.
        acc = jnp.zeros((hidden, HW), jnp.float32)
        for tap in range(9):
            s = tap_shift[tap]
            shifted = inp if s == 0 else pltpu.roll(inp, shift=s, axis=1)
            if tap_mask[tap] is not None:
                shifted = jnp.where(tap_mask[tap], shifted, 0.0)
            acc = acc + jnp.dot(wc_ref[idx, tap], shifted,
                                preferred_element_type=jnp.float32)
        return _selu(acc + bc_ref[idx])

    chunks = [y1]
    for i in range(num_blocks):                           # static unroll
        t = conv3x3(y1, 2 * i)
        t = conv3x3(t, 2 * i + 1)
        # PyTorch Bottleneck: add iff (shortcut and in==out); here in==out.
        y1 = y1 + t if shortcut_add else t
        chunks.append(y1)
    chunks.append(y2)

    # ---- cv2 as a sum of per-chunk matmuls (no sublane concat) ------------
    # w2 is tiny (Cout x (2+nb)*hidden, one vreg); static column slices of it
    # are far cheaper than relayout-concatenating the (.., HW) activations.
    w2 = w2_ref[...]
    out = jnp.zeros((w2.shape[0], HW), jnp.float32)
    for k, ch in enumerate(chunks):
        out = out + jnp.dot(w2[:, k * hidden:(k + 1) * hidden], ch,
                            preferred_element_type=jnp.float32)
    o_ref[...] = _selu(out + b2_ref[...])                 # (Cout, HW), lane-dense


# ---------------------------------------------------------------------------
# Parameter setup (deterministic, synthetic) + BN folding
# ---------------------------------------------------------------------------

def make_conv_params(key, cin, cout, k):
    kw, kg, kb, km, kv = jax.random.split(key, 5)
    return dict(
        w=jax.random.normal(kw, (cout, cin, k, k), jnp.float32) * 0.1,
        gamma=1.0 + 0.1 * jax.random.normal(kg, (cout,), jnp.float32),
        beta=0.1 * jax.random.normal(kb, (cout,), jnp.float32),
        mean=0.1 * jax.random.normal(km, (cout,), jnp.float32),
        var=1.0 + 0.1 * jnp.abs(jax.random.normal(kv, (cout,), jnp.float32)),
    )


def fold_bn(cp):
    """Fold eval-mode BN into the conv weight/bias."""
    scale = cp["gamma"] / jnp.sqrt(cp["var"] + BN_EPS)
    w = cp["w"] * scale[:, None, None, None]
    b = cp["beta"] - cp["mean"] * scale
    return w, b


def fold_1x1(cp):
    w, b = fold_bn(cp)                       # (Cout, Cin, 1, 1)
    return w[:, :, 0, 0], b[:, None]         # (Cout, Cin), (Cout, 1)


def fold_3x3_taps(cp):
    w, b = fold_bn(cp)                       # (Cout, Cin, 3, 3)
    cout, cin = w.shape[:2]
    # Per-tap weight matrices; tap index = dy*3 + dx, matching the kernel loop.
    w_taps = jnp.transpose(w, (2, 3, 0, 1)).reshape(9, cout, cin)
    return w_taps, b[:, None]                # (9, Cout, Cin), (Cout, 1)


def make_c2f_params(key, in_channels, out_channels, num_blocks=1,
                    shortcut=False, expansion=0.5):
    hidden = int(out_channels * expansion)
    keys = jax.random.split(key, 2 + 2 * num_blocks)
    params = dict(
        cv1=make_conv_params(keys[0], in_channels, 2 * hidden, 1),
        cv2=make_conv_params(keys[1],
                             2 * hidden + num_blocks * hidden,
                             out_channels, 1),
        bn_blocks=[],
        # Bottleneck(hidden, hidden, shortcut, expansion=1.0): in==out always,
        # so the PyTorch add-condition reduces to `shortcut`.
        shortcut_add=bool(shortcut),
        hidden=hidden,
    )
    for i in range(num_blocks):
        params["bn_blocks"].append(dict(
            c1=make_conv_params(keys[2 + 2 * i], hidden, hidden, 3),
            c2=make_conv_params(keys[3 + 2 * i], hidden, hidden, 3),
        ))
    return params


# ---------------------------------------------------------------------------
# C2F forward (single fused pallas_call)
# ---------------------------------------------------------------------------

def c2f_forward(x_nchw, params):
    N, Cin, H, W = x_nchw.shape
    HW = H * W
    hidden = params["hidden"]
    num_blocks = len(params["bn_blocks"])
    Cout = params["cv2"]["w"].shape[0]

    w1, b1 = fold_1x1(params["cv1"])
    w2, b2 = fold_1x1(params["cv2"])

    # Stack ALL bottleneck 3x3 weights / biases into single operands
    # (fewer separately double-buffered DMAs).
    wcs, bcs = [], []
    for blk in params["bn_blocks"]:
        for cp in (blk["c1"], blk["c2"]):
            wm, bv = fold_3x3_taps(cp)
            wcs.append(wm)
            bcs.append(bv)
    if num_blocks > 0:
        wc = jnp.stack(wcs)                  # (2*nb, 9, hidden, hidden)
        bc = jnp.stack(bcs)                  # (2*nb, hidden, 1)
    else:
        wc = jnp.zeros((1, 9, hidden, hidden), jnp.float32)
        bc = jnp.zeros((1, hidden, 1), jnp.float32)

    x3 = x_nchw.reshape(N, Cin, HW)          # free reshape: NCHW -> (N, C, HW)

    kernel = functools.partial(
        _c2f_fused_kernel, H=H, W=W, hidden=hidden,
        num_blocks=num_blocks, shortcut_add=params["shortcut_add"])

    out = pl.pallas_call(
        kernel,
        out_shape=jax.ShapeDtypeStruct((N, Cout, HW), jnp.float32),
        grid=(N,),
        in_specs=[
            pl.BlockSpec((pl.Squeezed(), Cin, HW), lambda n: (n, 0, 0)),
            pl.BlockSpec(w1.shape, lambda n: (0, 0)),
            pl.BlockSpec(b1.shape, lambda n: (0, 0)),
            pl.BlockSpec(wc.shape, lambda n: (0, 0, 0, 0)),
            pl.BlockSpec(bc.shape, lambda n: (0, 0, 0)),
            pl.BlockSpec(w2.shape, lambda n: (0, 0)),
            pl.BlockSpec(b2.shape, lambda n: (0, 0)),
        ],
        out_specs=pl.BlockSpec((pl.Squeezed(), Cout, HW), lambda n: (n, 0, 0)),
        compiler_params=pltpu.CompilerParams(
            # N=2 parallel steps: shards across the 2 TCs on v7x; on single-TC
            # chips the extra grid step costs ~0.35 us (negligible here).
            dimension_semantics=("parallel",)),
    )(x3, w1, b1, wc, bc, w2, b2)

    return out.reshape(N, Cout, H, W)        # free reshape back to NCHW


# ---------------------------------------------------------------------------
# Pure-JAX reference (NCHW, mirrors the PyTorch module in eval mode)
# ---------------------------------------------------------------------------

def _ref_conv_bn_selu(x, cp, padding):
    y = jax.lax.conv_general_dilated(
        x, cp["w"], window_strides=(1, 1),
        padding=[(padding, padding), (padding, padding)],
        dimension_numbers=("NCHW", "OIHW", "NCHW"))
    scale = cp["gamma"] / jnp.sqrt(cp["var"] + BN_EPS)
    y = y * scale[None, :, None, None] + \
        (cp["beta"] - cp["mean"] * scale)[None, :, None, None]
    return SELU_SCALE * jnp.where(y > 0, y, SELU_ALPHA * jnp.expm1(y))


def c2f_reference(x, params):
    y = _ref_conv_bn_selu(x, params["cv1"], 0)
    h = params["hidden"]
    y1, y2 = y[:, :h], y[:, h:]
    outputs = [y1]
    for blk in params["bn_blocks"]:
        t = _ref_conv_bn_selu(y1, blk["c1"], 1)
        t = _ref_conv_bn_selu(t, blk["c2"], 1)
        y1 = y1 + t if params["shortcut_add"] else t
        outputs.append(y1)
    return _ref_conv_bn_selu(jnp.concatenate(outputs + [y2], axis=1),
                             params["cv2"], 0)


# ---------------------------------------------------------------------------

if __name__ == "__main__":
    key = jax.random.PRNGKey(0)
    k_x, k_p = jax.random.split(key)

    # C2F(in_channels=4, out_channels=8, num_blocks=1, shortcut=False, expansion=0.5)
    N, C_in, H, W = 2, 4, 16, 16
    x = jax.random.normal(k_x, (N, C_in, H, W), jnp.float32)
    params = make_c2f_params(k_p, in_channels=4, out_channels=8,
                             num_blocks=1, shortcut=False, expansion=0.5)

    out = c2f_forward(x, params)
    out = jax.block_until_ready(out)

    ref = jax.block_until_ready(c2f_reference(x, params))
    assert out.shape == ref.shape == (N, 8, H, W), (out.shape, ref.shape)
    assert jnp.allclose(out, ref, rtol=1e-4, atol=1e-4), \
        float(jnp.max(jnp.abs(out - ref)))

    print("KERNEL_OK")
</pallas_src>

<mosaic_0001>
module attributes {stable_mosaic.version = 11 : i64} {
  func.func @_c2f_fused_kernel(%arg0: i32, %arg1: memref<1x4x256xf32, #tpu.memory_space<vmem>>, %arg2: memref<8x4xf32, #tpu.memory_space<vmem>>, %arg3: memref<8x1xf32, #tpu.memory_space<vmem>>, %arg4: memref<2x9x4x4xf32, #tpu.memory_space<vmem>>, %arg5: memref<2x4x1xf32, #tpu.memory_space<vmem>>, %arg6: memref<8x12xf32, #tpu.memory_space<vmem>>, %arg7: memref<8x1xf32, #tpu.memory_space<vmem>>, %arg8: memref<1x8x256xf32, #tpu.memory_space<vmem>>) attributes {dimension_semantics = [#tpu.dimension_semantics<parallel>], iteration_bounds = array<i64: 2>, scalar_prefetch = 0 : i64, scratch_operands = 0 : i64, tpu.core_type = #tpu.core_type<tc>, window_params = [{transform_indices = @transform_0, window_bounds = array<i64: 1, 4, 256>}, {pipeline_mode = #tpu.pipeline_mode<synchronous>, transform_indices = @transform_1, window_bounds = array<i64: 8, 4>}, {pipeline_mode = #tpu.pipeline_mode<synchronous>, transform_indices = @transform_2, window_bounds = array<i64: 8, 1>}, {pipeline_mode = #tpu.pipeline_mode<synchronous>, transform_indices = @transform_3, window_bounds = array<i64: 2, 9, 4, 4>}, {pipeline_mode = #tpu.pipeline_mode<synchronous>, transform_indices = @transform_4, window_bounds = array<i64: 2, 4, 1>}, {pipeline_mode = #tpu.pipeline_mode<synchronous>, transform_indices = @transform_5, window_bounds = array<i64: 8, 12>}, {pipeline_mode = #tpu.pipeline_mode<synchronous>, transform_indices = @transform_6, window_bounds = array<i64: 8, 1>}, {transform_indices = @transform_7, window_bounds = array<i64: 1, 8, 256>}]} {
    %c0 = arith.constant 0 : index
    %c0_0 = arith.constant 0 : index
    %c0_1 = arith.constant 0 : index
    %0 = vector.load %arg1[%c0, %c0_0, %c0_1] : memref<1x4x256xf32, #tpu.memory_space<vmem>>, vector<1x4x256xf32>
    %1 = vector.shape_cast %0 : vector<1x4x256xf32> to vector<4x256xf32>
    %c0_2 = arith.constant 0 : index
    %c0_3 = arith.constant 0 : index
    %2 = vector.load %arg2[%c0_2, %c0_3] : memref<8x4xf32, #tpu.memory_space<vmem>>, vector<8x4xf32>
    %cst = arith.constant dense<0.000000e+00> : vector<8x256xf32>
    %3 = tpu.matmul %2, %1, %cst {dimension_numbers = #tpu.dot_dimension_numbers<[1], [0], [0], [1], [0, 0, 1, 1], [], []>} : vector<8x4xf32>, vector<4x256xf32>, vector<8x256xf32> -> vector<8x256xf32>
    %c0_4 = arith.constant 0 : index
    %c0_5 = arith.constant 0 : index
    %4 = vector.load %arg3[%c0_4, %c0_5] : memref<8x1xf32, #tpu.memory_space<vmem>>, vector<8x1xf32>
    %5 = vector.broadcast %4 : vector<8x1xf32> to vector<8x256xf32>
    %6 = arith.addf %3, %5 : vector<8x256xf32>
    %cst_6 = arith.constant 0.000000e+00 : f32
    %7 = vector.broadcast %cst_6 : f32 to vector<8x256xf32>
    %8 = arith.cmpf ogt, %6, %7 : vector<8x256xf32>
    %9 = math.exp %6 : vector<8x256xf32>
    %cst_7 = arith.constant 1.000000e+00 : f32
    %10 = vector.broadcast %cst_7 : f32 to vector<8x256xf32>
    %11 = arith.subf %9, %10 : vector<8x256xf32>
    %cst_8 = arith.constant 1.67326319 : f32
    %12 = vector.broadcast %cst_8 : f32 to vector<8x256xf32>
    %13 = arith.mulf %12, %11 : vector<8x256xf32>
    %14 = arith.select %8, %6, %13 : vector<8x256xi1>, vector<8x256xf32>
    %cst_9 = arith.constant 1.05070102 : f32
    %15 = vector.broadcast %cst_9 : f32 to vector<8x256xf32>
    %16 = arith.mulf %15, %14 : vector<8x256xf32>
    %17 = vector.extract_strided_slice %16 {offsets = [0, 0], sizes = [4, 256], strides = [1, 1]} : vector<8x256xf32> to vector<4x256xf32>
    %18 = vector.extract_strided_slice %16 {offsets = [4, 0], sizes = [4, 256], strides = [1, 1]} : vector<8x256xf32> to vector<4x256xf32>
    %19 = tpu.iota {dimensions = array<i32: 1>} : vector<1x256xi32>
    %c15_i32 = arith.constant 15 : i32
    %20 = vector.broadcast %c15_i32 : i32 to vector<1x256xi32>
    %21 = arith.andi %19, %20 : vector<1x256xi32>
    %c16_i32 = arith.constant 16 : i32
    %22 = vector.broadcast %c16_i32 : i32 to vector<1x256xi32>
    %23 = arith.cmpi sge, %19, %22 : vector<1x256xi32>
    %c1_i32 = arith.constant 1 : i32
    %24 = vector.broadcast %c1_i32 : i32 to vector<1x256xi32>
    %25 = arith.cmpi sge, %21, %24 : vector<1x256xi32>
    %26 = arith.andi %23, %25 : vector<1x256xi1>
    %c16_i32_10 = arith.constant 16 : i32
    %27 = vector.broadcast %c16_i32_10 : i32 to vector<1x256xi32>
    %28 = arith.cmpi sge, %19, %27 : vector<1x256xi32>
    %c16_i32_11 = arith.constant 16 : i32
    %29 = vector.broadcast %c16_i32_11 : i32 to vector<1x256xi32>
    %30 = arith.cmpi sge, %19, %29 : vector<1x256xi32>
    %c15_i32_12 = arith.constant 15 : i32
    %31 = vector.broadcast %c15_i32_12 : i32 to vector<1x256xi32>
    %32 = arith.cmpi slt, %21, %31 : vector<1x256xi32>
    %33 = arith.andi %30, %32 : vector<1x256xi1>
    %c1_i32_13 = arith.constant 1 : i32
    %34 = vector.broadcast %c1_i32_13 : i32 to vector<1x256xi32>
    %35 = arith.cmpi sge, %21, %34 : vector<1x256xi32>
    %c15_i32_14 = arith.constant 15 : i32
    %36 = vector.broadcast %c15_i32_14 : i32 to vector<1x256xi32>
    %37 = arith.cmpi slt, %21, %36 : vector<1x256xi32>
    %c240_i32 = arith.constant 240 : i32
    %38 = vector.broadcast %c240_i32 : i32 to vector<1x256xi32>
    %39 = arith.cmpi slt, %19, %38 : vector<1x256xi32>
    %c1_i32_15 = arith.constant 1 : i32
    %40 = vector.broadcast %c1_i32_15 : i32 to vector<1x256xi32>
    %41 = arith.cmpi sge, %21, %40 : vector<1x256xi32>
    %42 = arith.andi %39, %41 : vector<1x256xi1>
    %c240_i32_16 = arith.constant 240 : i32
    %43 = vector.broadcast %c240_i32_16 : i32 to vector<1x256xi32>
    %44 = arith.cmpi slt, %19, %43 : vector<1x256xi32>
    %c240_i32_17 = arith.constant 240 : i32
    %45 = vector.broadcast %c240_i32_17 : i32 to vector<1x256xi32>
    %46 = arith.cmpi slt, %19, %45 : vector<1x256xi32>
    %c15_i32_18 = arith.constant 15 : i32
    %47 = vector.broadcast %c15_i32_18 : i32 to vector<1x256xi32>
    %48 = arith.cmpi slt, %21, %47 : vector<1x256xi32>
    %49 = arith.andi %46, %48 : vector<1x256xi1>
    %cst_19 = arith.constant 0.000000e+00 : f32
    %50 = vector.broadcast %cst_19 : f32 to vector<4x256xf32>
    %c17_i32 = arith.constant 17 : i32
    %51 = tpu.dynamic_rotate %17 by %c17_i32 dim 1 : vector<4x256xf32>, i32 -> vector<4x256xf32>
    %cst_20 = arith.constant 0.000000e+00 : f32
    %52 = vector.shape_cast %26 : vector<1x256xi1> to vector<1x256xi1>
    %53 = vector.broadcast %52 : vector<1x256xi1> to vector<4x256xi1>
    %54 = vector.broadcast %cst_20 : f32 to vector<4x256xf32>
    %55 = arith.select %53, %51, %54 : vector<4x256xi1>, vector<4x256xf32>
    %c0_21 = arith.constant 0 : index
    %c0_22 = arith.constant 0 : index
    %c0_23 = arith.constant 0 : index
    %c0_24 = arith.constant 0 : index
    %56 = vector.load %arg4[%c0_21, %c0_22, %c0_23, %c0_24] : memref<2x9x4x4xf32, #tpu.memory_space<vmem>>, vector<1x1x4x4xf32>
    %57 = vector.shape_cast %56 : vector<1x1x4x4xf32> to vector<4x4xf32>
    %cst_25 = arith.constant dense<0.000000e+00> : vector<4x256xf32>
    %58 = tpu.matmul %57, %55, %cst_25 {dimension_numbers = #tpu.dot_dimension_numbers<[1], [0], [0], [1], [0, 0, 1, 1], [], []>} : vector<4x4xf32>, vector<4x256xf32>, vector<4x256xf32> -> vector<4x256xf32>
    %59 = arith.addf %50, %58 : vector<4x256xf32>
    %c16_i32_26 = arith.constant 16 : i32
    %60 = tpu.dynamic_rotate %17 by %c16_i32_26 dim 1 : vector<4x256xf32>, i32 -> vector<4x256xf32>
    %cst_27 = arith.constant 0.000000e+00 : f32
    %61 = vector.shape_cast %28 : vector<1x256xi1> to vector<1x256xi1>
    %62 = vector.broadcast %61 : vector<1x256xi1> to vector<4x256xi1>
    %63 = vector.broadcast %cst_27 : f32 to vector<4x256xf32>
    %64 = arith.select %62, %60, %63 : vector<4x256xi1>, vector<4x256xf32>
    %c0_28 = arith.constant 0 : index
    %c1 = arith.constant 1 : index
    %c0_29 = arith.constant 0 : index
    %c0_30 = arith.constant 0 : index
    %65 = vector.load %arg4[%c0_28, %c1, %c0_29, %c0_30] : memref<2x9x4x4xf32, #tpu.memory_space<vmem>>, vector<1x1x4x4xf32>
    %66 = vector.shape_cast %65 : vector<1x1x4x4xf32> to vector<4x4xf32>
    %cst_31 = arith.constant dense<0.000000e+00> : vector<4x256xf32>
    %67 = tpu.matmul %66, %64, %cst_31 {dimension_numbers = #tpu.dot_dimension_numbers<[1], [0], [0], [1], [0, 0, 1, 1], [], []>} : vector<4x4xf32>, vector<4x256xf32>, vector<4x256xf32> -> vector<4x256xf32>
    %68 = arith.addf %59, %67 : vector<4x256xf32>
    %c15_i32_32 = arith.constant 15 : i32
    %69 = tpu.dynamic_rotate %17 by %c15_i32_32 dim 1 : vector<4x256xf32>, i32 -> vector<4x256xf32>
    %cst_33 = arith.constant 0.000000e+00 : f32
    %70 = vector.shape_cast %33 : vector<1x256xi1> to vector<1x256xi1>
    %71 = vector.broadcast %70 : vector<1x256xi1> to vector<4x256xi1>
    %72 = vector.broadcast %cst_33 : f32 to vector<4x256xf32>
    %73 = arith.select %71, %69, %72 : vector<4x256xi1>, vector<4x256xf32>
    %c0_34 = arith.constant 0 : index
    %c2 = arith.constant 2 : index
    %c0_35 = arith.constant 0 : index
    %c0_36 = arith.constant 0 : index
    %74 = vector.load %arg4[%c0_34, %c2, %c0_35, %c0_36] : memref<2x9x4x4xf32, #tpu.memory_space<vmem>>, vector<1x1x4x4xf32>
    %75 = vector.shape_cast %74 : vector<1x1x4x4xf32> to vector<4x4xf32>
    %cst_37 = arith.constant dense<0.000000e+00> : vector<4x256xf32>
    %76 = tpu.matmul %75, %73, %cst_37 {dimension_numbers = #tpu.dot_dimension_numbers<[1], [0], [0], [1], [0, 0, 1, 1], [], []>} : vector<4x4xf32>, vector<4x256xf32>, vector<4x256xf32> -> vector<4x256xf32>
    %77 = arith.addf %68, %76 : vector<4x256xf32>
    %c1_i32_38 = arith.constant 1 : i32
    %78 = tpu.dynamic_rotate %17 by %c1_i32_38 dim 1 : vector<4x256xf32>, i32 -> vector<4x256xf32>
    %cst_39 = arith.constant 0.000000e+00 : f32
    %79 = vector.shape_cast %35 : vector<1x256xi1> to vector<1x256xi1>
    %80 = vector.broadcast %79 : vector<1x256xi1> to vector<4x256xi1>
    %81 = vector.broadcast %cst_39 : f32 to vector<4x256xf32>
    %82 = arith.select %80, %78, %81 : vector<4x256xi1>, vector<4x256xf32>
    %c0_40 = arith.constant 0 : index
    %c3 = arith.constant 3 : index
    %c0_41 = arith.constant 0 : index
    %c0_42 = arith.constant 0 : index
    %83 = vector.load %arg4[%c0_40, %c3, %c0_41, %c0_42] : memref<2x9x4x4xf32, #tpu.memory_space<vmem>>, vector<1x1x4x4xf32>
    %84 = vector.shape_cast %83 : vector<1x1x4x4xf32> to vector<4x4xf32>
    %cst_43 = arith.constant dense<0.000000e+00> : vector<4x256xf32>
    %85 = tpu.matmul %84, %82, %cst_43 {dimension_numbers = #tpu.dot_dimension_numbers<[1], [0], [0], [1], [0, 0, 1, 1], [], []>} : vector<4x4xf32>, vector<4x256xf32>, vector<4x256xf32> -> vector<4x256xf32>
    %86 = arith.addf %77, %85 : vector<4x256xf32>
    %c0_44 = arith.constant 0 : index
    %c4 = arith.constant 4 : index
    %c0_45 = arith.constant 0 : index
    %c0_46 = arith.constant 0 : index
    %87 = vector.load %arg4[%c0_44, %c4, %c0_45, %c0_46] : memref<2x9x4x4xf32, #tpu.memory_space<vmem>>, vector<1x1x4x4xf32>
    %88 = vector.shape_cast %87 : vector<1x1x4x4xf32> to vector<4x4xf32>
    %cst_47 = arith.constant dense<0.000000e+00> : vector<4x256xf32>
    %89 = tpu.matmul %88, %17, %cst_47 {dimension_numbers = #tpu.dot_dimension_numbers<[1], [0], [0], [1], [0, 0, 1, 1], [], []>} : vector<4x4xf32>, vector<4x256xf32>, vector<4x256xf32> -> vector<4x256xf32>
    %90 = arith.addf %86, %89 : vector<4x256xf32>
    %c255_i32 = arith.constant 255 : i32
    %91 = tpu.dynamic_rotate %17 by %c255_i32 dim 1 : vector<4x256xf32>, i32 -> vector<4x256xf32>
    %cst_48 = arith.constant 0.000000e+00 : f32
    %92 = vector.shape_cast %37 : vector<1x256xi1> to vector<1x256xi1>
    %93 = vector.broadcast %92 : vector<1x256xi1> to vector<4x256xi1>
    %94 = vector.broadcast %cst_48 : f32 to vector<4x256xf32>
    %95 = arith.select %93, %91, %94 : vector<4x256xi1>, vector<4x256xf32>
    %c0_49 = arith.constant 0 : index
    %c5 = arith.constant 5 : index
    %c0_50 = arith.constant 0 : index
    %c0_51 = arith.constant 0 : index
    %96 = vector.load %arg4[%c0_49, %c5, %c0_50, %c0_51] : memref<2x9x4x4xf32, #tpu.memory_space<vmem>>, vector<1x1x4x4xf32>
    %97 = vector.shape_cast %96 : vector<1x1x4x4xf32> to vector<4x4xf32>
    %cst_52 = arith.constant dense<0.000000e+00> : vector<4x256xf32>
    %98 = tpu.matmul %97, %95, %cst_52 {dimension_numbers = #tpu.dot_dimension_numbers<[1], [0], [0], [1], [0, 0, 1, 1], [], []>} : vector<4x4xf32>, vector<4x256xf32>, vector<4x256xf32> -> vector<4x256xf32>
    %99 = arith.addf %90, %98 : vector<4x256xf32>
    %c241_i32 = arith.constant 241 : i32
    %100 = tpu.dynamic_rotate %17 by %c241_i32 dim 1 : vector<4x256xf32>, i32 -> vector<4x256xf32>
    %cst_53 = arith.constant 0.000000e+00 : f32
    %101 = vector.shape_cast %42 : vector<1x256xi1> to vector<1x256xi1>
    %102 = vector.broadcast %101 : vector<1x256xi1> to vector<4x256xi1>
    %103 = vector.broadcast %cst_53 : f32 to vector<4x256xf32>
    %104 = arith.select %102, %100, %103 : vector<4x256xi1>, vector<4x256xf32>
    %c0_54 = arith.constant 0 : index
    %c6 = arith.constant 6 : index
    %c0_55 = arith.constant 0 : index
    %c0_56 = arith.constant 0 : index
    %105 = vector.load %arg4[%c0_54, %c6, %c0_55, %c0_56] : memref<2x9x4x4xf32, #tpu.memory_space<vmem>>, vector<1x1x4x4xf32>
    %106 = vector.shape_cast %105 : vector<1x1x4x4xf32> to vector<4x4xf32>
    %cst_57 = arith.constant dense<0.000000e+00> : vector<4x256xf32>
    %107 = tpu.matmul %106, %104, %cst_57 {dimension_numbers = #tpu.dot_dimension_numbers<[1], [0], [0], [1], [0, 0, 1, 1], [], []>} : vector<4x4xf32>, vector<4x256xf32>, vector<4x256xf32> -> vector<4x256xf32>
    %108 = arith.addf %99, %107 : vector<4x256xf32>
    %c240_i32_58 = arith.constant 240 : i32
    %109 = tpu.dynamic_rotate %17 by %c240_i32_58 dim 1 : vector<4x256xf32>, i32 -> vector<4x256xf32>
    %cst_59 = arith.constant 0.000000e+00 : f32
    %110 = vector.shape_cast %44 : vector<1x256xi1> to vector<1x256xi1>
    %111 = vector.broadcast %110 : vector<1x256xi1> to vector<4x256xi1>
    %112 = vector.broadcast %cst_59 : f32 to vector<4x256xf32>
    %113 = arith.select %111, %109, %112 : vector<4x256xi1>, vector<4x256xf32>
    %c0_60 = arith.constant 0 : index
    %c7 = arith.constant 7 : index
    %c0_61 = arith.constant 0 : index
    %c0_62 = arith.constant 0 : index
    %114 = vector.load %arg4[%c0_60, %c7, %c0_61, %c0_62] : memref<2x9x4x4xf32, #tpu.memory_space<vmem>>, vector<1x1x4x4xf32>
    %115 = vector.shape_cast %114 : vector<1x1x4x4xf32> to vector<4x4xf32>
    %cst_63 = arith.constant dense<0.000000e+00> : vector<4x256xf32>
    %116 = tpu.matmul %115, %113, %cst_63 {dimension_numbers = #tpu.dot_dimension_numbers<[1], [0], [0], [1], [0, 0, 1, 1], [], []>} : vector<4x4xf32>, vector<4x256xf32>, vector<4x256xf32> -> vector<4x256xf32>
    %117 = arith.addf %108, %116 : vector<4x256xf32>
    %c239_i32 = arith.constant 239 : i32
    %118 = tpu.dynamic_rotate %17 by %c239_i32 dim 1 : vector<4x256xf32>, i32 -> vector<4x256xf32>
    %cst_64 = arith.constant 0.000000e+00 : f32
    %119 = vector.shape_cast %49 : vector<1x256xi1> to vector<1x256xi1>
    %120 = vector.broadcast %119 : vector<1x256xi1> to vector<4x256xi1>
    %121 = vector.broadcast %cst_64 : f32 to vector<4x256xf32>
    %122 = arith.select %120, %118, %121 : vector<4x256xi1>, vector<4x256xf32>
    %c0_65 = arith.constant 0 : index
    %c8 = arith.constant 8 : index
    %c0_66 = arith.constant 0 : index
    %c0_67 = arith.constant 0 : index
    %123 = vector.load %arg4[%c0_65, %c8, %c0_66, %c0_67] : memref<2x9x4x4xf32, #tpu.memory_space<vmem>>, vector<1x1x4x4xf32>
    %124 = vector.shape_cast %123 : vector<1x1x4x4xf32> to vector<4x4xf32>
    %cst_68 = arith.constant dense<0.000000e+00> : vector<4x256xf32>
    %125 = tpu.matmul %124, %122, %cst_68 {dimension_numbers = #tpu.dot_dimension_numbers<[1], [0], [0], [1], [0, 0, 1, 1], [], []>} : vector<4x4xf32>, vector<4x256xf32>, vector<4x256xf32> -> vector<4x256xf32>
    %126 = arith.addf %117, %125 : vector<4x256xf32>
    %c0_69 = arith.constant 0 : index
    %c0_70 = arith.constant 0 : index
    %c0_71 = arith.constant 0 : index
    %127 = vector.load %arg5[%c0_69, %c0_70, %c0_71] : memref<2x4x1xf32, #tpu.memory_space<vmem>>, vector<1x4x1xf32>
    %128 = vector.shape_cast %127 : vector<1x4x1xf32> to vector<4x1xf32>
    %129 = vector.broadcast %128 : vector<4x1xf32> to vector<4x256xf32>
    %130 = arith.addf %126, %129 : vector<4x256xf32>
    %cst_72 = arith.constant 0.000000e+00 : f32
    %131 = vector.broadcast %cst_72 : f32 to vector<4x256xf32>
    %132 = arith.cmpf ogt, %130, %131 : vector<4x256xf32>
    %133 = math.exp %130 : vector<4x256xf32>
    %cst_73 = arith.constant 1.000000e+00 : f32
    %134 = vector.broadcast %cst_73 : f32 to vector<4x256xf32>
    %135 = arith.subf %133, %134 : vector<4x256xf32>
    %cst_74 = arith.constant 1.67326319 : f32
    %136 = vector.broadcast %cst_74 : f32 to vector<4x256xf32>
    %137 = arith.mulf %136, %135 : vector<4x256xf32>
    %138 = arith.select %132, %130, %137 : vector<4x256xi1>, vector<4x256xf32>
    %cst_75 = arith.constant 1.05070102 : f32
    %139 = vector.broadcast %cst_75 : f32 to vector<4x256xf32>
    %140 = arith.mulf %139, %138 : vector<4x256xf32>
    %cst_76 = arith.constant 0.000000e+00 : f32
    %141 = vector.broadcast %cst_76 : f32 to vector<4x256xf32>
    %c17_i32_77 = arith.constant 17 : i32
    %142 = tpu.dynamic_rotate %140 by %c17_i32_77 dim 1 : vector<4x256xf32>, i32 -> vector<4x256xf32>
    %cst_78 = arith.constant 0.000000e+00 : f32
    %143 = vector.shape_cast %26 : vector<1x256xi1> to vector<1x256xi1>
    %144 = vector.broadcast %143 : vector<1x256xi1> to vector<4x256xi1>
    %145 = vector.broadcast %cst_78 : f32 to vector<4x256xf32>
    %146 = arith.select %144, %142, %145 : vector<4x256xi1>, vector<4x256xf32>
    %c1_79 = arith.constant 1 : index
    %c0_80 = arith.constant 0 : index
    %c0_81 = arith.constant 0 : index
    %c0_82 = arith.constant 0 : index
    %147 = vector.load %arg4[%c1_79, %c0_80, %c0_81, %c0_82] : memref<2x9x4x4xf32, #tpu.memory_space<vmem>>, vector<1x1x4x4xf32>
    %148 = vector.shape_cast %147 : vector<1x1x4x4xf32> to vector<4x4xf32>
    %cst_83 = arith.constant dense<0.000000e+00> : vector<4x256xf32>
    %149 = tpu.matmul %148, %146, %cst_83 {dimension_numbers = #tpu.dot_dimension_numbers<[1], [0], [0], [1], [0, 0, 1, 1], [], []>} : vector<4x4xf32>, vector<4x256xf32>, vector<4x256xf32> -> vector<4x256xf32>
    %150 = arith.addf %141, %149 : vector<4x256xf32>
    %c16_i32_84 = arith.constant 16 : i32
    %151 = tpu.dynamic_rotate %140 by %c16_i32_84 dim 1 : vector<4x256xf32>, i32 -> vector<4x256xf32>
    %cst_85 = arith.constant 0.000000e+00 : f32
    %152 = vector.shape_cast %28 : vector<1x256xi1> to vector<1x256xi1>
    %153 = vector.broadcast %152 : vector<1x256xi1> to vector<4x256xi1>
    %154 = vector.broadcast %cst_85 : f32 to vector<4x256xf32>
    %155 = arith.select %153, %151, %154 : vector<4x256xi1>, vector<4x256xf32>
    %c1_86 = arith.constant 1 : index
    %c1_87 = arith.constant 1 : index
    %c0_88 = arith.constant 0 : index
    %c0_89 = arith.constant 0 : index
    %156 = vector.load %arg4[%c1_86, %c1_87, %c0_88, %c0_89] : memref<2x9x4x4xf32, #tpu.memory_space<vmem>>, vector<1x1x4x4xf32>
    %157 = vector.shape_cast %156 : vector<1x1x4x4xf32> to vector<4x4xf32>
    %cst_90 = arith.constant dense<0.000000e+00> : vector<4x256xf32>
    %158 = tpu.matmul %157, %155, %cst_90 {dimension_numbers = #tpu.dot_dimension_numbers<[1], [0], [0], [1], [0, 0, 1, 1], [], []>} : vector<4x4xf32>, vector<4x256xf32>, vector<4x256xf32> -> vector<4x256xf32>
    %159 = arith.addf %150, %158 : vector<4x256xf32>
    %c15_i32_91 = arith.constant 15 : i32
    %160 = tpu.dynamic_rotate %140 by %c15_i32_91 dim 1 : vector<4x256xf32>, i32 -> vector<4x256xf32>
    %cst_92 = arith.constant 0.000000e+00 : f32
    %161 = vector.shape_cast %33 : vector<1x256xi1> to vector<1x256xi1>
    %162 = vector.broadcast %161 : vector<1x256xi1> to vector<4x256xi1>
    %163 = vector.broadcast %cst_92 : f32 to vector<4x256xf32>
    %164 = arith.select %162, %160, %163 : vector<4x256xi1>, vector<4x256xf32>
    %c1_93 = arith.constant 1 : index
    %c2_94 = arith.constant 2 : index
    %c0_95 = arith.constant 0 : index
    %c0_96 = arith.constant 0 : index
    %165 = vector.load %arg4[%c1_93, %c2_94, %c0_95, %c0_96] : memref<2x9x4x4xf32, #tpu.memory_space<vmem>>, vector<1x1x4x4xf32>
    %166 = vector.shape_cast %165 : vector<1x1x4x4xf32> to vector<4x4xf32>
    %cst_97 = arith.constant dense<0.000000e+00> : vector<4x256xf32>
    %167 = tpu.matmul %166, %164, %cst_97 {dimension_numbers = #tpu.dot_dimension_numbers<[1], [0], [0], [1], [0, 0, 1, 1], [], []>} : vector<4x4xf32>, vector<4x256xf32>, vector<4x256xf32> -> vector<4x256xf32>
    %168 = arith.addf %159, %167 : vector<4x256xf32>
    %c1_i32_98 = arith.constant 1 : i32
    %169 = tpu.dynamic_rotate %140 by %c1_i32_98 dim 1 : vector<4x256xf32>, i32 -> vector<4x256xf32>
    %cst_99 = arith.constant 0.000000e+00 : f32
    %170 = vector.shape_cast %35 : vector<1x256xi1> to vector<1x256xi1>
    %171 = vector.broadcast %170 : vector<1x256xi1> to vector<4x256xi1>
    %172 = vector.broadcast %cst_99 : f32 to vector<4x256xf32>
    %173 = arith.select %171, %169, %172 : vector<4x256xi1>, vector<4x256xf32>
    %c1_100 = arith.constant 1 : index
    %c3_101 = arith.constant 3 : index
    %c0_102 = arith.constant 0 : index
    %c0_103 = arith.constant 0 : index
    %174 = vector.load %arg4[%c1_100, %c3_101, %c0_102, %c0_103] : memref<2x9x4x4xf32, #tpu.memory_space<vmem>>, vector<1x1x4x4xf32>
    %175 = vector.shape_cast %174 : vector<1x1x4x4xf32> to vector<4x4xf32>
    %cst_104 = arith.constant dense<0.000000e+00> : vector<4x256xf32>
    %176 = tpu.matmul %175, %173, %cst_104 {dimension_numbers = #tpu.dot_dimension_numbers<[1], [0], [0], [1], [0, 0, 1, 1], [], []>} : vector<4x4xf32>, vector<4x256xf32>, vector<4x256xf32> -> vector<4x256xf32>
    %177 = arith.addf %168, %176 : vector<4x256xf32>
    %c1_105 = arith.constant 1 : index
    %c4_106 = arith.constant 4 : index
    %c0_107 = arith.constant 0 : index
    %c0_108 = arith.constant 0 : index
    %178 = vector.load %arg4[%c1_105, %c4_106, %c0_107, %c0_108] : memref<2x9x4x4xf32, #tpu.memory_space<vmem>>, vector<1x1x4x4xf32>
    %179 = vector.shape_cast %178 : vector<1x1x4x4xf32> to vector<4x4xf32>
    %cst_109 = arith.constant dense<0.000000e+00> : vector<4x256xf32>
    %180 = tpu.matmul %179, %140, %cst_109 {dimension_numbers = #tpu.dot_dimension_numbers<[1], [0], [0], [1], [0, 0, 1, 1], [], []>} : vector<4x4xf32>, vector<4x256xf32>, vector<4x256xf32> -> vector<4x256xf32>
    %181 = arith.addf %177, %180 : vector<4x256xf32>
    %c255_i32_110 = arith.constant 255 : i32
    %182 = tpu.dynamic_rotate %140 by %c255_i32_110 dim 1 : vector<4x256xf32>, i32 -> vector<4x256xf32>
    %cst_111 = arith.constant 0.000000e+00 : f32
    %183 = vector.shape_cast %37 : vector<1x256xi1> to vector<1x256xi1>
    %184 = vector.broadcast %183 : vector<1x256xi1> to vector<4x256xi1>
    %185 = vector.broadcast %cst_111 : f32 to vector<4x256xf32>
    %186 = arith.select %184, %182, %185 : vector<4x256xi1>, vector<4x256xf32>
    %c1_112 = arith.constant 1 : index
    %c5_113 = arith.constant 5 : index
    %c0_114 = arith.constant 0 : index
    %c0_115 = arith.constant 0 : index
    %187 = vector.load %arg4[%c1_112, %c5_113, %c0_114, %c0_115] : memref<2x9x4x4xf32, #tpu.memory_space<vmem>>, vector<1x1x4x4xf32>
    %188 = vector.shape_cast %187 : vector<1x1x4x4xf32> to vector<4x4xf32>
    %cst_116 = arith.constant dense<0.000000e+00> : vector<4x256xf32>
    %189 = tpu.matmul %188, %186, %cst_116 {dimension_numbers = #tpu.dot_dimension_numbers<[1], [0], [0], [1], [0, 0, 1, 1], [], []>} : vector<4x4xf32>, vector<4x256xf32>, vector<4x256xf32> -> vector<4x256xf32>
    %190 = arith.addf %181, %189 : vector<4x256xf32>
    %c241_i32_117 = arith.constant 241 : i32
    %191 = tpu.dynamic_rotate %140 by %c241_i32_117 dim 1 : vector<4x256xf32>, i32 -> vector<4x256xf32>
    %cst_118 = arith.constant 0.000000e+00 : f32
    %192 = vector.shape_cast %42 : vector<1x256xi1> to vector<1x256xi1>
    %193 = vector.broadcast %192 : vector<1x256xi1> to vector<4x256xi1>
    %194 = vector.broadcast %cst_118 : f32 to vector<4x256xf32>
    %195 = arith.select %193, %191, %194 : vector<4x256xi1>, vector<4x256xf32>
    %c1_119 = arith.constant 1 : index
    %c6_120 = arith.constant 6 : index
    %c0_121 = arith.constant 0 : index
    %c0_122 = arith.constant 0 : index
    %196 = vector.load %arg4[%c1_119, %c6_120, %c0_121, %c0_122] : memref<2x9x4x4xf32, #tpu.memory_space<vmem>>, vector<1x1x4x4xf32>
    %197 = vector.shape_cast %196 : vector<1x1x4x4xf32> to vector<4x4xf32>
    %cst_123 = arith.constant dense<0.000000e+00> : vector<4x256xf32>
    %198 = tpu.matmul %197, %195, %cst_123 {dimension_numbers = #tpu.dot_dimension_numbers<[1], [0], [0], [1], [0, 0, 1, 1], [], []>} : vector<4x4xf32>, vector<4x256xf32>, vector<4x256xf32> -> vector<4x256xf32>
    %199 = arith.addf %190, %198 : vector<4x256xf32>
    %c240_i32_124 = arith.constant 240 : i32
    %200 = tpu.dynamic_rotate %140 by %c240_i32_124 dim 1 : vector<4x256xf32>, i32 -> vector<4x256xf32>
    %cst_125 = arith.constant 0.000000e+00 : f32
    %201 = vector.shape_cast %44 : vector<1x256xi1> to vector<1x256xi1>
    %202 = vector.broadcast %201 : vector<1x256xi1> to vector<4x256xi1>
    %203 = vector.broadcast %cst_125 : f32 to vector<4x256xf32>
    %204 = arith.select %202, %200, %203 : vector<4x256xi1>, vector<4x256xf32>
    %c1_126 = arith.constant 1 : index
    %c7_127 = arith.constant 7 : index
    %c0_128 = arith.constant 0 : index
    %c0_129 = arith.constant 0 : index
    %205 = vector.load %arg4[%c1_126, %c7_127, %c0_128, %c0_129] : memref<2x9x4x4xf32, #tpu.memory_space<vmem>>, vector<1x1x4x4xf32>
    %206 = vector.shape_cast %205 : vector<1x1x4x4xf32> to vector<4x4xf32>
    %cst_130 = arith.constant dense<0.000000e+00> : vector<4x256xf32>
    %207 = tpu.matmul %206, %204, %cst_130 {dimension_numbers = #tpu.dot_dimension_numbers<[1], [0], [0], [1], [0, 0, 1, 1], [], []>} : vector<4x4xf32>, vector<4x256xf32>, vector<4x256xf32> -> vector<4x256xf32>
    %208 = arith.addf %199, %207 : vector<4x256xf32>
    %c239_i32_131 = arith.constant 239 : i32
    %209 = tpu.dynamic_rotate %140 by %c239_i32_131 dim 1 : vector<4x256xf32>, i32 -> vector<4x256xf32>
    %cst_132 = arith.constant 0.000000e+00 : f32
    %210 = vector.shape_cast %49 : vector<1x256xi1> to vector<1x256xi1>
    %211 = vector.broadcast %210 : vector<1x256xi1> to vector<4x256xi1>
    %212 = vector.broadcast %cst_132 : f32 to vector<4x256xf32>
    %213 = arith.select %211, %209, %212 : vector<4x256xi1>, vector<4x256xf32>
    %c1_133 = arith.constant 1 : index
    %c8_134 = arith.constant 8 : index
    %c0_135 = arith.constant 0 : index
    %c0_136 = arith.constant 0 : index
    %214 = vector.load %arg4[%c1_133, %c8_134, %c0_135, %c0_136] : memref<2x9x4x4xf32, #tpu.memory_space<vmem>>, vector<1x1x4x4xf32>
    %215 = vector.shape_cast %214 : vector<1x1x4x4xf32> to vector<4x4xf32>
    %cst_137 = arith.constant dense<0.000000e+00> : vector<4x256xf32>
    %216 = tpu.matmul %215, %213, %cst_137 {dimension_numbers = #tpu.dot_dimension_numbers<[1], [0], [0], [1], [0, 0, 1, 1], [], []>} : vector<4x4xf32>, vector<4x256xf32>, vector<4x256xf32> -> vector<4x256xf32>
    %217 = arith.addf %208, %216 : vector<4x256xf32>
    %c1_138 = arith.constant 1 : index
    %c0_139 = arith.constant 0 : index
    %c0_140 = arith.constant 0 : index
    %218 = vector.load %arg5[%c1_138, %c0_139, %c0_140] : memref<2x4x1xf32, #tpu.memory_space<vmem>>, vector<1x4x1xf32>
    %219 = vector.shape_cast %218 : vector<1x4x1xf32> to vector<4x1xf32>
    %220 = vector.broadcast %219 : vector<4x1xf32> to vector<4x256xf32>
    %221 = arith.addf %217, %220 : vector<4x256xf32>
    %cst_141 = arith.constant 0.000000e+00 : f32
    %222 = vector.broadcast %cst_141 : f32 to vector<4x256xf32>
    %223 = arith.cmpf ogt, %221, %222 : vector<4x256xf32>
    %224 = math.exp %221 : vector<4x256xf32>
    %cst_142 = arith.constant 1.000000e+00 : f32
    %225 = vector.broadcast %cst_142 : f32 to vector<4x256xf32>
    %226 = arith.subf %224, %225 : vector<4x256xf32>
    %cst_143 = arith.constant 1.67326319 : f32
    %227 = vector.broadcast %cst_143 : f32 to vector<4x256xf32>
    %228 = arith.mulf %227, %226 : vector<4x256xf32>
    %229 = arith.select %223, %221, %228 : vector<4x256xi1>, vector<4x256xf32>
    %cst_144 = arith.constant 1.05070102 : f32
    %230 = vector.broadcast %cst_144 : f32 to vector<4x256xf32>
    %231 = arith.mulf %230, %229 : vector<4x256xf32>
    %c0_145 = arith.constant 0 : index
    %c0_146 = arith.constant 0 : index
    %232 = vector.load %arg6[%c0_145, %c0_146] : memref<8x12xf32, #tpu.memory_space<vmem>>, vector<8x12xf32>
    %cst_147 = arith.constant 0.000000e+00 : f32
    %233 = vector.broadcast %cst_147 : f32 to vector<8x256xf32>
    %234 = vector.extract_strided_slice %232 {offsets = [0, 0], sizes = [8, 4], strides = [1, 1]} : vector<8x12xf32> to vector<8x4xf32>
    %cst_148 = arith.constant dense<0.000000e+00> : vector<8x256xf32>
    %235 = tpu.matmul %234, %17, %cst_148 {dimension_numbers = #tpu.dot_dimension_numbers<[1], [0], [0], [1], [0, 0, 1, 1], [], []>} : vector<8x4xf32>, vector<4x256xf32>, vector<8x256xf32> -> vector<8x256xf32>
    %236 = arith.addf %233, %235 : vector<8x256xf32>
    %237 = vector.extract_strided_slice %232 {offsets = [0, 4], sizes = [8, 4], strides = [1, 1]} : vector<8x12xf32> to vector<8x4xf32>
    %cst_149 = arith.constant dense<0.000000e+00> : vector<8x256xf32>
    %238 = tpu.matmul %237, %231, %cst_149 {dimension_numbers = #tpu.dot_dimension_numbers<[1], [0], [0], [1], [0, 0, 1, 1], [], []>} : vector<8x4xf32>, vector<4x256xf32>, vector<8x256xf32> -> vector<8x256xf32>
    %239 = arith.addf %236, %238 : vector<8x256xf32>
    %240 = vector.extract_strided_slice %232 {offsets = [0, 8], sizes = [8, 4], strides = [1, 1]} : vector<8x12xf32> to vector<8x4xf32>
    %cst_150 = arith.constant dense<0.000000e+00> : vector<8x256xf32>
    %241 = tpu.matmul %240, %18, %cst_150 {dimension_numbers = #tpu.dot_dimension_numbers<[1], [0], [0], [1], [0, 0, 1, 1], [], []>} : vector<8x4xf32>, vector<4x256xf32>, vector<8x256xf32> -> vector<8x256xf32>
    %242 = arith.addf %239, %241 : vector<8x256xf32>
    %c0_151 = arith.constant 0 : index
    %c0_152 = arith.constant 0 : index
    %243 = vector.load %arg7[%c0_151, %c0_152] : memref<8x1xf32, #tpu.memory_space<vmem>>, vector<8x1xf32>
    %244 = vector.broadcast %243 : vector<8x1xf32> to vector<8x256xf32>
    %245 = arith.addf %242, %244 : vector<8x256xf32>
    %cst_153 = arith.constant 0.000000e+00 : f32
    %246 = vector.broadcast %cst_153 : f32 to vector<8x256xf32>
    %247 = arith.cmpf ogt, %245, %246 : vector<8x256xf32>
    %248 = math.exp %245 : vector<8x256xf32>
    %cst_154 = arith.constant 1.000000e+00 : f32
    %249 = vector.broadcast %cst_154 : f32 to vector<8x256xf32>
    %250 = arith.subf %248, %249 : vector<8x256xf32>
    %cst_155 = arith.constant 1.67326319 : f32
    %251 = vector.broadcast %cst_155 : f32 to vector<8x256xf32>
    %252 = arith.mulf %251, %250 : vector<8x256xf32>
    %253 = arith.select %247, %245, %252 : vector<8x256xi1>, vector<8x256xf32>
    %cst_156 = arith.constant 1.05070102 : f32
    %254 = vector.broadcast %cst_156 : f32 to vector<8x256xf32>
    %255 = arith.mulf %254, %253 : vector<8x256xf32>
    %c0_157 = arith.constant 0 : index
    %c0_158 = arith.constant 0 : index
    %c0_159 = arith.constant 0 : index
    %256 = vector.load %arg8[%c0_157, %c0_158, %c0_159] : memref<1x8x256xf32, #tpu.memory_space<vmem>>, vector<1x8x256xf32>
    %257 = vector.shape_cast %256 : vector<1x8x256xf32> to vector<8x256xf32>
    %258 = vector.shape_cast %255 : vector<8x256xf32> to vector<1x8x256xf32>
    tpu.vector_store %arg8[%c0_157, %c0_158, %c0_159], %258 {strides = array<i32>} : memref<1x8x256xf32, #tpu.memory_space<vmem>>, vector<1x8x256xf32>,
    return
  }
  func.func @transform_0(%arg0: i32) -> (i32, i32, i32) {
    %c0_i32 = arith.constant 0 : i32
    %c0_i32_0 = arith.constant 0 : i32
    %c0_i32_1 = arith.constant 0 : i32
    return %arg0, %c0_i32, %c0_i32_0 : i32, i32, i32
  }
  func.func @transform_1(%arg0: i32) -> (i32, i32) {
    %c0_i32 = arith.constant 0 : i32
    %c0_i32_0 = arith.constant 0 : i32
    %c0_i32_1 = arith.constant 0 : i32
    return %c0_i32, %c0_i32_0 : i32, i32
  }
  func.func @transform_2(%arg0: i32) -> (i32, i32) {
    %c0_i32 = arith.constant 0 : i32
    %c0_i32_0 = arith.constant 0 : i32
    %c0_i32_1 = arith.constant 0 : i32
    return %c0_i32, %c0_i32_0 : i32, i32
  }
  func.func @transform_3(%arg0: i32) -> (i32, i32, i32, i32) {
    %c0_i32 = arith.constant 0 : i32
    %c0_i32_0 = arith.constant 0 : i32
    %c0_i32_1 = arith.constant 0 : i32
    %c0_i32_2 = arith.constant 0 : i32
    %c0_i32_3 = arith.constant 0 : i32
    return %c0_i32, %c0_i32_0, %c0_i32_1, %c0_i32_2 : i32, i32, i32, i32
  }
  func.func @transform_4(%arg0: i32) -> (i32, i32, i32) {
    %c0_i32 = arith.constant 0 : i32
    %c0_i32_0 = arith.constant 0 : i32
    %c0_i32_1 = arith.constant 0 : i32
    %c0_i32_2 = arith.constant 0 : i32
    return %c0_i32, %c0_i32_0, %c0_i32_1 : i32, i32, i32
  }
  func.func @transform_5(%arg0: i32) -> (i32, i32) {
    %c0_i32 = arith.constant 0 : i32
    %c0_i32_0 = arith.constant 0 : i32
    %c0_i32_1 = arith.constant 0 : i32
    return %c0_i32, %c0_i32_0 : i32, i32
  }
  func.func @transform_6(%arg0: i32) -> (i32, i32) {
    %c0_i32 = arith.constant 0 : i32
    %c0_i32_0 = arith.constant 0 : i32
    %c0_i32_1 = arith.constant 0 : i32
    return %c0_i32, %c0_i32_0 : i32, i32
  }
  func.func @transform_7(%arg0: i32) -> (i32, i32, i32) {
    %c0_i32 = arith.constant 0 : i32
    %c0_i32_0 = arith.constant 0 : i32
    %c0_i32_1 = arith.constant 0 : i32
    return %arg0, %c0_i32, %c0_i32_0 : i32, i32, i32
  }
}

</mosaic_0001>

<llo_original>
// kernel: tpu_custom_call.1
$region0: #{tpu_custom_call.1}
  #allocation0 [shape = 'u32[]', space=smem, size = 0x4, offset = 0x4, fixed_abs, tag = 'smem constant byte address 0x4 - core index']
  #allocation1 [shape = 'u32[144,128]{1,0:T(1,128)}', space=vmem, size = 0x12000, scoped, tag = 'internal scratch']
  %s0 = inlined_call_operand.vmem [shape: f32[2,4,256], index: 0, kind: input, shape index: {}]
  %s1 = inlined_call_operand.vmem [shape: f32[8,4], index: 1, kind: input, shape index: {}]
  %s2 = inlined_call_operand.vmem [shape: f32[8,1], index: 2, kind: input, shape index: {}]
  %s3 = inlined_call_operand.vmem [shape: f32[2,9,4,4], index: 3, kind: input, shape index: {}]
  %s4 = inlined_call_operand.vmem [shape: f32[2,4,1], index: 4, kind: input, shape index: {}]
  %s5 = inlined_call_operand.vmem [shape: f32[8,12], index: 5, kind: input, shape index: {}]
  %s6 = inlined_call_operand.vmem [shape: f32[8,1], index: 6, kind: input, shape index: {}]
  %s7 = inlined_call_operand.hbm [shape: f32[2,8,256], index: 7, kind: output, shape index: {}]
  %s8 = sld [smem:[#allocation0]]
  $region61: #{tpu_custom_call.1} parent=0
    _
  %s10 = ssub.s32 1, %s8
  %s11 = scalar_select 0, %s10, %s8
  $region1: #{tpu_custom_call.1} parent=0
    #allocation2 [shape = 'u8[16384]{0}', space=vmem, size = 0x4000, scoped, tag = 'output window, operand 0']
    #allocation3 [shape = 's32[2]{0}', space=sflag, size = 0x8, scoped, tag = 'scoped memory for tpu_custom_call.1']
    %12 = vsyncpa [#allocation3], 0
    %s13 = scalar_lea.sflag [#allocation3], 1
    %14 = vsyncpa %s13, 0
    loop: start=0, step=1, limit=4
    $region2: #{tpu_custom_call.1} parent=1 // loop_pre_header
      _
    $region3: #{tpu_custom_call.1} parent=1 // loop_header
      %s16 = sphi 0, %s20
      %p17 = scmp.ge.s32.totalorder %s16, 4
      %s26 = sphi 0, %s28
      %s29 = sphi 0, %s26
      %s30 = sphi 0, %s29
      %s46 = sphi 0, %s30
      %s50 = sphi 0, %s50
      %s52 = sphi 0, %s50
      %s53 = sphi 0, %s52
      %s67 = sphi 0, %s53
      %s71 = sphi 0, %s71
      %s73 = sphi 0, %s71
      %s74 = sphi 0, %s73
      %s88 = sphi 0, %s74
      %s92 = sphi 0, %s92
      %s94 = sphi 0, %s92
      %s95 = sphi 0, %s94
      %s109 = sphi 0, %s95
      %s113 = sphi 0, %s113
      %s115 = sphi 0, %s113
      %s116 = sphi 0, %s115
      %s130 = sphi 0, %s116
      %s134 = sphi 0, %s134
      %s136 = sphi 0, %s134
      %s137 = sphi 0, %s136
      %s151 = sphi 0, %s137
      %s155 = sphi 0, %s155
      %s157 = sphi 0, %s155
      %s158 = sphi 0, %s157
      %s172 = sphi 0, %s158
      %s178 = sphi 0, %s180
      %s181 = sphi 0, %s178
      %s182 = sphi 0, %s181
      %s198 = sphi 0, %s182
    $region4: #{tpu_custom_call.1} parent=1 // loop_header_branch
      %19 = sbr.rel (%p17) target = $region8
    $region5: #{tpu_custom_call.1} parent=1 // loop_body
      %s21 = ssub.s32 %s16, 1
      %s22 = ssub.s32 %s16, 2
      %s23 = sadd.s32 %s16, 1
      %s24 = ssub.s32 %s16, %s23
      %p25 = scmp.eq.s32.totalorder %s24, 0
      %s27 = sadd.s32 %s26, 1
      %s28 = scalar_select %p25, %s26, %s27
      %p31 = pneg %p25
      %p32 = scmp.eq.s32.totalorder %s16, 1
      %p33 = por %p31, %p32
      %p34 = scmp.ne.s32.totalorder %s26, %s29
      %p35 = scmp.eq.s32.totalorder %s16, 0
      %p36 = por %p34, %p35
      %p37 = scmp.ne.s32.totalorder %s26, %s29
      %p38 = scmp.eq.s32.totalorder %s21, 1
      %p39 = por %p37, %p38
      %p40 = scmp.ne.s32.totalorder %s29, %s30
      %p41 = scmp.eq.s32.totalorder %s21, 0
      %p42 = por %p40, %p41
      %p43 = scmp.ne.s32.totalorder %s29, %s30
      %p44 = scmp.eq.s32.totalorder %s22, 1
      %p45 = por %p43, %p44
      %p47 = scmp.ne.s32.totalorder %s30, %s46
      %p48 = scmp.eq.s32.totalorder %s22, 0
      %p49 = por %p47, %p48
      %s51 = sadd.s32 %s50, 1
      %p54 = scmp.eq.s32.totalorder %s16, 1
      %p55 = scmp.ne.s32.totalorder %s50, %s52
      %p56 = scmp.eq.s32.totalorder %s16, 0
      %p57 = por %p55, %p56
      %p58 = scmp.ne.s32.totalorder %s50, %s52
      %p59 = scmp.eq.s32.totalorder %s21, 1
      %p60 = por %p58, %p59
      %p61 = scmp.ne.s32.totalorder %s52, %s53
      %p62 = scmp.eq.s32.totalorder %s21, 0
      %p63 = por %p61, %p62
      %p64 = scmp.ne.s32.totalorder %s52, %s53
      %p65 = scmp.eq.s32.totalorder %s22, 1
      %p66 = por %p64, %p65
      %p68 = scmp.ne.s32.totalorder %s53, %s67
      %p69 = scmp.eq.s32.totalorder %s22, 0
      %p70 = por %p68, %p69
      %s72 = sadd.s32 %s71, 1
      %p75 = scmp.eq.s32.totalorder %s16, 1
      %p76 = scmp.ne.s32.totalorder %s71, %s73
      %p77 = scmp.eq.s32.totalorder %s16, 0
      %p78 = por %p76, %p77
      %p79 = scmp.ne.s32.totalorder %s71, %s73
      %p80 = scmp.eq.s32.totalorder %s21, 1
      %p81 = por %p79, %p80
      %p82 = scmp.ne.s32.totalorder %s73, %s74
      %p83 = scmp.eq.s32.totalorder %s21, 0
      %p84 = por %p82, %p83
      %p85 = scmp.ne.s32.totalorder %s73, %s74
      %p86 = scmp.eq.s32.totalorder %s22, 1
      %p87 = por %p85, %p86
      %p89 = scmp.ne.s32.totalorder %s74, %s88
      %p90 = scmp.eq.s32.totalorder %s22, 0
      %p91 = por %p89, %p90
      %s93 = sadd.s32 %s92, 1
      %p96 = scmp.eq.s32.totalorder %s16, 1
      %p97 = scmp.ne.s32.totalorder %s92, %s94
      %p98 = scmp.eq.s32.totalorder %s16, 0
      %p99 = por %p97, %p98
      %p100 = scmp.ne.s32.totalorder %s92, %s94
      %p101 = scmp.eq.s32.totalorder %s21, 1
      %p102 = por %p100, %p101
      %p103 = scmp.ne.s32.totalorder %s94, %s95
      %p104 = scmp.eq.s32.totalorder %s21, 0
      %p105 = por %p103, %p104
      %p106 = scmp.ne.s32.totalorder %s94, %s95
      %p107 = scmp.eq.s32.totalorder %s22, 1
      %p108 = por %p106, %p107
      %p110 = scmp.ne.s32.totalorder %s95, %s109
      %p111 = scmp.eq.s32.totalorder %s22, 0
      %p112 = por %p110, %p111
      %s114 = sadd.s32 %s113, 1
      %p117 = scmp.eq.s32.totalorder %s16, 1
      %p118 = scmp.ne.s32.totalorder %s113, %s115
      %p119 = scmp.eq.s32.totalorder %s16, 0
      %p120 = por %p118, %p119
      %p121 = scmp.ne.s32.totalorder %s113, %s115
      %p122 = scmp.eq.s32.totalorder %s21, 1
      %p123 = por %p121, %p122
      %p124 = scmp.ne.s32.totalorder %s115, %s116
      %p125 = scmp.eq.s32.totalorder %s21, 0
      %p126 = por %p124, %p125
      %p127 = scmp.ne.s32.totalorder %s115, %s116
      %p128 = scmp.eq.s32.totalorder %s22, 1
      %p129 = por %p127, %p128
      %p131 = scmp.ne.s32.totalorder %s116, %s130
      %p132 = scmp.eq.s32.totalorder %s22, 0
      %p133 = por %p131, %p132
      %s135 = sadd.s32 %s134, 1
      %p138 = scmp.eq.s32.totalorder %s16, 1
      %p139 = scmp.ne.s32.totalorder %s134, %s136
      %p140 = scmp.eq.s32.totalorder %s16, 0
      %p141 = por %p139, %p140
      %p142 = scmp.ne.s32.totalorder %s134, %s136
      %p143 = scmp.eq.s32.totalorder %s21, 1
      %p144 = por %p142, %p143
      %p145 = scmp.ne.s32.totalorder %s136, %s137
      %p146 = scmp.eq.s32.totalorder %s21, 0
      %p147 = por %p145, %p146
      %p148 = scmp.ne.s32.totalorder %s136, %s137
      %p149 = scmp.eq.s32.totalorder %s22, 1
      %p150 = por %p148, %p149
      %p152 = scmp.ne.s32.totalorder %s137, %s151
      %p153 = scmp.eq.s32.totalorder %s22, 0
      %p154 = por %p152, %p153
      %s156 = sadd.s32 %s155, 1
      %p159 = scmp.eq.s32.totalorder %s16, 1
      %p160 = scmp.ne.s32.totalorder %s155, %s157
      %p161 = scmp.eq.s32.totalorder %s16, 0
      %p162 = por %p160, %p161
      %p163 = scmp.ne.s32.totalorder %s155, %s157
      %p164 = scmp.eq.s32.totalorder %s21, 1
      %p165 = por %p163, %p164
      %p166 = scmp.ne.s32.totalorder %s157, %s158
      %p167 = scmp.eq.s32.totalorder %s21, 0
      %p168 = por %p166, %p167
      %p169 = scmp.ne.s32.totalorder %s157, %s158
      %p170 = scmp.eq.s32.totalorder %s22, 1
      %p171 = por %p169, %p170
      %p173 = scmp.ne.s32.totalorder %s158, %s172
      %p174 = scmp.eq.s32.totalorder %s22, 0
      %p175 = por %p173, %p174
      %s176 = ssub.s32 %s16, %s23
      %p177 = scmp.eq.s32.totalorder %s176, 0
      %s179 = sadd.s32 %s178, 1
      %s180 = scalar_select %p177, %s178, %s179
      %p183 = pneg %p177
      %p184 = scmp.eq.s32.totalorder %s16, 1
      %p185 = por %p183, %p184
      %p186 = scmp.ne.s32.totalorder %s178, %s181
      %p187 = scmp.eq.s32.totalorder %s16, 0
      %p188 = por %p186, %p187
      %p189 = scmp.ne.s32.totalorder %s178, %s181
      %p190 = scmp.eq.s32.totalorder %s21, 1
      %p191 = por %p189, %p190
      %p192 = scmp.ne.s32.totalorder %s181, %s182
      %p193 = scmp.eq.s32.totalorder %s21, 0
      %p194 = por %p192, %p193
      %p195 = scmp.ne.s32.totalorder %s181, %s182
      %p196 = scmp.eq.s32.totalorder %s22, 1
      %p197 = por %p195, %p196
      %p199 = scmp.ne.s32.totalorder %s182, %s198
      %p200 = scmp.eq.s32.totalorder %s22, 0
      %p201 = por %p199, %p200
      %p202 = scmp.le.s32.totalorder 1, %s16
      %p203 = scmp.lt.s32.totalorder %s16, 3
      %p204 = pnand %p202, %p203
      %p205 = pneg %p204
      // Predicated region
      $region9: #{tpu_custom_call.1} parent=5 // pred_check
        _
      $region10: #{tpu_custom_call.1} parent=5 // pred_check_branch
        %207 = sbr.rel (%p204) target = $region12
      $region11: #{tpu_custom_call.1} parent=5 // pred_region
        %s208 = ssub.s32 %s16, 1
        // Predicated region
        $region13: #{tpu_custom_call.1} parent=11 // pred_check
          %p209 = pneg %p63
        $region14: #{tpu_custom_call.1} parent=11 // pred_check_branch
          %211 = sbr.rel (%p209) target = $region16
        $region15: #{tpu_custom_call.1} parent=11 // pred_region
          _
        $region16: #{tpu_custom_call.1} parent=11 // pred_fallthru
          _
        // Predicated region
        $region17: #{tpu_custom_call.1} parent=11 // pred_check
          %p212 = pneg %p84
        $region18: #{tpu_custom_call.1} parent=11 // pred_check_branch
          %214 = sbr.rel (%p212) target = $region20
        $region19: #{tpu_custom_call.1} parent=11 // pred_region
          _
        $region20: #{tpu_custom_call.1} parent=11 // pred_fallthru
          _
        // Predicated region
        $region21: #{tpu_custom_call.1} parent=11 // pred_check
          %p215 = pneg %p105
        $region22: #{tpu_custom_call.1} parent=11 // pred_check_branch
          %217 = sbr.rel (%p215) target = $region24
        $region23: #{tpu_custom_call.1} parent=11 // pred_region
          _
        $region24: #{tpu_custom_call.1} parent=11 // pred_fallthru
          _
        // Predicated region
        $region25: #{tpu_custom_call.1} parent=11 // pred_check
          %p218 = pneg %p126
        $region26: #{tpu_custom_call.1} parent=11 // pred_check_branch
          %220 = sbr.rel (%p218) target = $region28
        $region27: #{tpu_custom_call.1} parent=11 // pred_region
          _
        $region28: #{tpu_custom_call.1} parent=11 // pred_fallthru
          _
        // Predicated region
        $region29: #{tpu_custom_call.1} parent=11 // pred_check
          %p221 = pneg %p147
        $region30: #{tpu_custom_call.1} parent=11 // pred_check_branch
          %223 = sbr.rel (%p221) target = $region32
        $region31: #{tpu_custom_call.1} parent=11 // pred_region
          _
        $region32: #{tpu_custom_call.1} parent=11 // pred_fallthru
          _
        // Predicated region
        $region33: #{tpu_custom_call.1} parent=11 // pred_check
          %p224 = pneg %p168
        $region34: #{tpu_custom_call.1} parent=11 // pred_check_branch
          %226 = sbr.rel (%p224) target = $region36
        $region35: #{tpu_custom_call.1} parent=11 // pred_region
          _
        $region36: #{tpu_custom_call.1} parent=11 // pred_fallthru
          _
      $region12: #{tpu_custom_call.1} parent=5 // pred_fallthru
        _
      %p227 = scmp.lt.s32.totalorder %s16, 2
      // Predicated region
      $region37: #{tpu_custom_call.1} parent=5 // pred_check
        %p228 = pneg %p227
      $region38: #{tpu_custom_call.1} parent=5 // pred_check_branch
        %230 = sbr.rel (%p228) target = $region40
      $region39: #{tpu_custom_call.1} parent=5 // pred_region
        // Predicated region
        $region41: #{tpu_custom_call.1} parent=39 // pred_check
          %p231 = pneg %p36
        $region42: #{tpu_custom_call.1} parent=39 // pred_check_branch
          %233 = sbr.rel (%p231) target = $region44
        $region43: #{tpu_custom_call.1} parent=39 // pred_region
          %p234 = scmp.lt.s32.totalorder %s16, 1
          %s235 = scalar_select %p234, %s16, 1
          %s236 = smul.addr %s235, 2
          %s237 = smul.addr %s236, 4
          %s238 = scalar_lea.vmem %s0, %s237
        $region44: #{tpu_custom_call.1} parent=39 // pred_fallthru
          _
      $region40: #{tpu_custom_call.1} parent=5 // pred_fallthru
        _
      %p239 = scmp.le.s32.totalorder 1, %s16
      %p240 = scmp.lt.s32.totalorder %s16, 3
      %p241 = pnand %p239, %p240
      %p242 = pneg %p241
      // Predicated region
      $region45: #{tpu_custom_call.1} parent=5 // pred_check
        _
      $region46: #{tpu_custom_call.1} parent=5 // pred_check_branch
        %244 = sbr.rel (%p241) target = $region48
      $region47: #{tpu_custom_call.1} parent=5 // pred_region
        %s245 = ssub.s32 %s16, 1
        %p246 = scmp.lt.s32.totalorder %s21, 1
        %s247 = scalar_select %p246, %s21, 1
        %s248 = smul.addr %s247, 2
        %s249 = smul.addr %s248, 4
        %s250 = scalar_lea.vmem %s0, %s249
        %p251 = pneg %p42
        %p252 = pneg %p39
        %p253 = pneg %p63
        %p254 = pneg %p60
        %p255 = pneg %p84
        %p256 = pneg %p81
        %p257 = pneg %p105
        %p258 = pneg %p102
        %p259 = pneg %p126
        %p260 = pneg %p123
        %p261 = pneg %p147
        %p262 = pneg %p144
        %p263 = pneg %p168
        %p264 = pneg %p165
        %p265 = pneg %p194
        %p266 = pneg %p191
        %s267 = sand.u32 %s181, 1
        %s268 = scalar_lea.sflag [#allocation3], %s267
        %s269 = sand.u32 %s181, 1
        %s270 = smul.addr %s269, 16
        %s271 = scalar_lea.vmem [#allocation2], %s270
        %p272 = scmp.lt.s32.totalorder %s21, 1
        %s273 = scalar_select %p272, %s21, 1
        %s274 = smul.addr %s273, 2
        %s275 = smul.addr %s274, 4
        %s276 = scalar_lea.vmem %s0, %s275
        %v277 = vld [vmem:[%s276] sm:$0xff]
        %v278 = vld [vmem:[%s1] sm:$0xff]
        %v279 = vld [vmem:[%s2] sm:$0xff]
        %281 = vset.pattern.permute.xlu0 0
        %282 = vperm.xlu0 %281, %v279
        %v283 = vpop.permute.xlu0 %282
        %v286 = vcombine.high %v277, %v277
        %vm287 = vcmask 31744
        %v289 = vsel %vm287, %v278, 0
        %vm291 = vcmask 1043456
        %v292 = vsel %vm291, %v277, 0
        %v294 = vsel %vm291, %v286, 0
        %296 = vmatprep.subr.mxu0 %v294
        %297 = vmatpush1.msra.mxu0 %v292
        %298 = vmatprep.subr.mxu0 0.0
        %299 = vmatpush1.msra.mxu0 0.0
        %300 = vmatprep.subr.mxu0 0.0
        %301 = vmatpush1.msra.mxu0 0.0
        %302 = vmatprep.subr.mxu0 0.0
        %303 = vmatpush1.msra.mxu0 0.0
        %304 = vmatprep.subr.mxu0 0.0
        %305 = vmatpush1.msra.mxu0 0.0
        %306 = vmatprep.subr.mxu0 0.0
        %307 = vmatpush1.msra.mxu0 0.0
        %308 = vmatprep.subr.mxu0 0.0
        %309 = vmatpush1.msra.mxu0 0.0
        %310 = vmatprep.subr.mxu0 0.0
        %311 = vmatpush1.msra.mxu0 0.0
        %312 = vmatprep.subr.mxu0 0.0
        %313 = vmatpush1.msra.mxu0 0.0
        %314 = vmatprep.subr.mxu0 0.0
        %315 = vmatpush1.msra.mxu0 0.0
        %316 = vmatprep.subr.mxu0 0.0
        %317 = vmatpush1.msra.mxu0 0.0
        %318 = vmatprep.subr.mxu0 0.0
        %319 = vmatpush1.msra.mxu0 0.0
        %320 = vmatprep.subr.mxu0 0.0
        %321 = vmatpush1.msra.mxu0 0.0
        %322 = vmatprep.subr.mxu0 0.0
        %323 = vmatpush1.msra.mxu0 0.0
        %324 = vmatprep.subr.mxu0 0.0
        %325 = vmatpush1.msra.mxu0 0.0
        %326 = vmatprep.subr.mxu0 0.0
        %327 = vmatpush1.msra.mxu0 0.0
        %328 = vmatprep.subr.mxu0 0.0
        %329 = vmatpush1.msra.mxu0 0.0
        %330 = vmatprep.subr.mxu0 0.0
        %331 = vmatpush1.msra.mxu0 0.0
        %332 = vmatprep.subr.mxu0 0.0
        %333 = vmatpush1.msra.mxu0 0.0
        %334 = vmatprep.subr.mxu0 0.0
        %335 = vmatpush1.msra.mxu0 0.0
        %336 = vmatprep.subr.mxu0 0.0
        %337 = vmatpush1.msra.mxu0 0.0
        %338 = vmatprep.subr.mxu0 0.0
        %339 = vmatpush1.msra.mxu0 0.0
        %340 = vmatprep.subr.mxu0 0.0
        %341 = vmatpush1.msra.mxu0 0.0
        %342 = vmatprep.subr.mxu0 0.0
        %343 = vmatpush1.msra.mxu0 0.0
        %344 = vmatprep.subr.mxu0 0.0
        %345 = vmatpush1.msra.mxu0 0.0
        %346 = vmatprep.subr.mxu0 0.0
        %347 = vmatpush1.msra.mxu0 0.0
        %348 = vmatprep.subr.mxu0 0.0
        %349 = vmatpush1.msra.mxu0 0.0
        %350 = vmatprep.subr.mxu0 0.0
        %351 = vmatpush1.msra.mxu0 0.0
        %352 = vmatprep.subr.mxu0 0.0
        %353 = vmatpush1.msra.mxu0 0.0
        %354 = vmatprep.subr.mxu0 0.0
        %355 = vmatpush1.msra.mxu0 0.0
        %356 = vmatprep.subr.mxu0 0.0
        %357 = vmatpush1.msra.mxu0 0.0
        %358 = vmatprep.subr.mxu0 0.0
        %359 = vmatpush1.msra.mxu0 0.0
        %360 = vmatprep.mubr.f32.mxu0 0.0
        %361 = vmatmul.mubr.f32.gmra.mrb[0].mxu0 %v289
        %v362 = vpop.f32.mrb[0].mxu0
        %v363 = vadd.f32 %v283, %v362
        %v364 = vpop.f32.mrb[0].mxu0
        %v365 = vadd.f32 %v283, %v364
        %366 = vdwg.mxu0
        %vm367 = vcmp.gt.f32.partialorder %v363, 0.0
        %vm368 = vcmp.gt.f32.partialorder %v365, 0.0
        %v369 = vmul.f32 %v363, 1.442695
        %v370 = vpow.pop %v369
        %v371 = vmul.f32 %v365, 1.442695
        %v372 = vpow.pop %v371
        %v373 = vsub.f32 %v370, 1.0
        %v374 = vsub.f32 %v372, 1.0
        %v375 = vmul.f32 %v373, 1.6732632
        %v376 = vmul.f32 %v374, 1.6732632
        %v377 = vsel %vm367, %v363, %v375
        %v378 = vsel %vm368, %v365, %v376
        %v379 = vmul.f32 %v377, 1.050701
        %v380 = vmul.f32 %v378, 1.050701
        %v381 = vlaneseq
        %v382 = vand.u32 %v381, 127
        %v383 = vadd.s32 %v382, 128
        %v384 = vand.u32 %v382, 15
        %v385 = vand.u32 %v383, 15
        %vm386 = vcmp.ge.s32.totalorder %v382, 16
        %vm387 = vcmp.ge.s32.totalorder %v383, 16
        %vm388 = vcmp.ge.s32.totalorder %v384, 1
        %vm389 = vcmp.ge.s32.totalorder %v385, 1
        %vm390 = vmand %vm386, %vm388
        %vm391 = vmand %vm387, %vm389
        %vm392 = vcmp.lt.s32.totalorder %v384, 15
        %vm393 = vcmp.lt.s32.totalorder %v385, 15
        %vm394 = vmand %vm386, %vm392
        %vm395 = vmand %vm387, %vm393
        %vm396 = vcmp.lt.s32.totalorder %v382, 240
        %vm397 = vcmp.lt.s32.totalorder %v383, 240
        %vm398 = vmand %vm396, %vm388
        %vm399 = vmand %vm397, %vm389
        %vm400 = vmand %vm396, %vm392
        %vm401 = vmand %vm397, %vm393
        %402 = vrot.lane.b32.xlu0 %v379, 17
        %v403 = vpop.permute.xlu0 %402
        %404 = vrot.lane.b32.xlu0 %v380, 17
        %v405 = vpop.permute.xlu0 %404
        %vm406 = vcmp.lt.s32.totalorder %v382, 17
        %v407 = vsel %vm406, %v403, %v405
        %v408 = vsel %vm406, %v405, %v403
        %v409 = vsel %vm390, 1, 0
        %v410 = vsel %vm391, 1, 0
        %vm411 = vcmp.eq.s32.totalorder %v409, 1
        %vm412 = vcmp.eq.s32.totalorder %v410, 1
        %v413 = vsel %vm411, %v408, 0.0
        %v414 = vsel %vm412, %v407, 0.0
        %v415 = vld [vmem:[%s3] sm:$0xf]
        %416 = vrot.lane.b32.xlu0 %v379, 16
        %v417 = vpop.permute.xlu0 %416
        %418 = vrot.lane.b32.xlu0 %v380, 16
        %v419 = vpop.permute.xlu0 %418
        %vm420 = vcmp.lt.s32.totalorder %v382, 16
        %v421 = vsel %vm420, %v417, %v419
        %v422 = vsel %vm420, %v419, %v417
        %v423 = vsel %vm386, 1, 0
        %v424 = vsel %vm387, 1, 0
        %vm425 = vcmp.eq.s32.totalorder %v423, 1
        %vm426 = vcmp.eq.s32.totalorder %v424, 1
        %v427 = vsel %vm425, %v422, 0.0
        %v428 = vsel %vm426, %v421, 0.0
        %s429 = scalar_lea.vmem %s3, 4
        %v430 = vld [vmem:[%s429] sm:$0xf]
        %v432 = vsel %vm287, %v430, 0
        %v435 = vsel %vm291, %v427, 0
        %v438 = vsel %vm291, %v428, 0
        %440 = vmatprep.subr.mxu0 %v438
        %441 = vmatpush1.msra.mxu0 %v435
        %442 = vmatprep.subr.mxu0 0.0
        %443 = vmatpush1.msra.mxu0 0.0
        %444 = vmatprep.subr.mxu0 0.0
        %445 = vmatpush1.msra.mxu0 0.0
        %446 = vmatprep.subr.mxu0 0.0
        %447 = vmatpush1.msra.mxu0 0.0
        %448 = vmatprep.subr.mxu0 0.0
        %449 = vmatpush1.msra.mxu0 0.0
        %450 = vmatprep.subr.mxu0 0.0
        %451 = vmatpush1.msra.mxu0 0.0
        %452 = vmatprep.subr.mxu0 0.0
        %453 = vmatpush1.msra.mxu0 0.0
        %454 = vmatprep.subr.mxu0 0.0
        %455 = vmatpush1.msra.mxu0 0.0
        %456 = vmatprep.subr.mxu0 0.0
        %457 = vmatpush1.msra.mxu0 0.0
        %458 = vmatprep.subr.mxu0 0.0
        %459 = vmatpush1.msra.mxu0 0.0
        %460 = vmatprep.subr.mxu0 0.0
        %461 = vmatpush1.msra.mxu0 0.0
        %462 = vmatprep.subr.mxu0 0.0
        %463 = vmatpush1.msra.mxu0 0.0
        %464 = vmatprep.subr.mxu0 0.0
        %465 = vmatpush1.msra.mxu0 0.0
        %466 = vmatprep.subr.mxu0 0.0
        %467 = vmatpush1.msra.mxu0 0.0
        %468 = vmatprep.subr.mxu0 0.0
        %469 = vmatpush1.msra.mxu0 0.0
        %470 = vmatprep.subr.mxu0 0.0
        %471 = vmatpush1.msra.mxu0 0.0
        %472 = vmatprep.subr.mxu0 0.0
        %473 = vmatpush1.msra.mxu0 0.0
        %474 = vmatprep.subr.mxu0 0.0
        %475 = vmatpush1.msra.mxu0 0.0
        %476 = vmatprep.subr.mxu0 0.0
        %477 = vmatpush1.msra.mxu0 0.0
        %478 = vmatprep.subr.mxu0 0.0
        %479 = vmatpush1.msra.mxu0 0.0
        %480 = vmatprep.subr.mxu0 0.0
        %481 = vmatpush1.msra.mxu0 0.0
        %482 = vmatprep.subr.mxu0 0.0
        %483 = vmatpush1.msra.mxu0 0.0
        %484 = vmatprep.subr.mxu0 0.0
        %485 = vmatpush1.msra.mxu0 0.0
        %486 = vmatprep.subr.mxu0 0.0
        %487 = vmatpush1.msra.mxu0 0.0
        %488 = vmatprep.subr.mxu0 0.0
        %489 = vmatpush1.msra.mxu0 0.0
        %490 = vmatprep.subr.mxu0 0.0
        %491 = vmatpush1.msra.mxu0 0.0
        %492 = vmatprep.subr.mxu0 0.0
        %493 = vmatpush1.msra.mxu0 0.0
        %494 = vmatprep.subr.mxu0 0.0
        %495 = vmatpush1.msra.mxu0 0.0
        %496 = vmatprep.subr.mxu0 0.0
        %497 = vmatpush1.msra.mxu0 0.0
        %498 = vmatprep.subr.mxu0 0.0
        %499 = vmatpush1.msra.mxu0 0.0
        %500 = vmatprep.subr.mxu0 0.0
        %501 = vmatpush1.msra.mxu0 0.0
        %502 = vmatprep.subr.mxu0 0.0
        %503 = vmatpush1.msra.mxu0 0.0
        %504 = vmatprep.mubr.f32.mxu0 0.0
        %505 = vmatmul.mubr.f32.gmra.mrb[0].mxu0 %v432
        %v506 = vpop.f32.mrb[0].mxu0
        %v507 = vadd.f32 0.0, %v506
        %v508 = vpop.f32.mrb[0].mxu0
        %v509 = vadd.f32 0.0, %v508
        %510 = vdwg.mxu0
        %v512 = vsel %vm287, %v415, 0
        %v515 = vsel %vm291, %v413, 0
        %v518 = vsel %vm291, %v414, 0
        %520 = vmatprep.subr.mxu0 %v518
        %521 = vmatpush1.msra.mxu0 %v515
        %522 = vmatprep.subr.mxu0 0.0
        %523 = vmatpush1.msra.mxu0 0.0
        %524 = vmatprep.subr.mxu0 0.0
        %525 = vmatpush1.msra.mxu0 0.0
        %526 = vmatprep.subr.mxu0 0.0
        %527 = vmatpush1.msra.mxu0 0.0
        %528 = vmatprep.subr.mxu0 0.0
        %529 = vmatpush1.msra.mxu0 0.0
        %530 = vmatprep.subr.mxu0 0.0
        %531 = vmatpush1.msra.mxu0 0.0
        %532 = vmatprep.subr.mxu0 0.0
        %533 = vmatpush1.msra.mxu0 0.0
        %534 = vmatprep.subr.mxu0 0.0
        %535 = vmatpush1.msra.mxu0 0.0
        %536 = vmatprep.subr.mxu0 0.0
        %537 = vmatpush1.msra.mxu0 0.0
        %538 = vmatprep.subr.mxu0 0.0
        %539 = vmatpush1.msra.mxu0 0.0
        %540 = vmatprep.subr.mxu0 0.0
        %541 = vmatpush1.msra.mxu0 0.0
        %542 = vmatprep.subr.mxu0 0.0
        %543 = vmatpush1.msra.mxu0 0.0
        %544 = vmatprep.subr.mxu0 0.0
        %545 = vmatpush1.msra.mxu0 0.0
        %546 = vmatprep.subr.mxu0 0.0
        %547 = vmatpush1.msra.mxu0 0.0
        %548 = vmatprep.subr.mxu0 0.0
        %549 = vmatpush1.msra.mxu0 0.0
        %550 = vmatprep.subr.mxu0 0.0
        %551 = vmatpush1.msra.mxu0 0.0
        %552 = vmatprep.subr.mxu0 0.0
        %553 = vmatpush1.msra.mxu0 0.0
        %554 = vmatprep.subr.mxu0 0.0
        %555 = vmatpush1.msra.mxu0 0.0
        %556 = vmatprep.subr.mxu0 0.0
        %557 = vmatpush1.msra.mxu0 0.0
        %558 = vmatprep.subr.mxu0 0.0
        %559 = vmatpush1.msra.mxu0 0.0
        %560 = vmatprep.subr.mxu0 0.0
        %561 = vmatpush1.msra.mxu0 0.0
        %562 = vmatprep.subr.mxu0 0.0
        %563 = vmatpush1.msra.mxu0 0.0
        %564 = vmatprep.subr.mxu0 0.0
        %565 = vmatpush1.msra.mxu0 0.0
        %566 = vmatprep.subr.mxu0 0.0
        %567 = vmatpush1.msra.mxu0 0.0
        %568 = vmatprep.subr.mxu0 0.0
        %569 = vmatpush1.msra.mxu0 0.0
        %570 = vmatprep.subr.mxu0 0.0
        %571 = vmatpush1.msra.mxu0 0.0
        %572 = vmatprep.subr.mxu0 0.0
        %573 = vmatpush1.msra.mxu0 0.0
        %574 = vmatprep.subr.mxu0 0.0
        %575 = vmatpush1.msra.mxu0 0.0
        %576 = vmatprep.subr.mxu0 0.0
        %577 = vmatpush1.msra.mxu0 0.0
        %578 = vmatprep.subr.mxu0 0.0
        %579 = vmatpush1.msra.mxu0 0.0
        %580 = vmatprep.subr.mxu0 0.0
        %581 = vmatpush1.msra.mxu0 0.0
        %582 = vmatprep.subr.mxu0 0.0
        %583 = vmatpush1.msra.mxu0 0.0
        %584 = vmatprep.mubr.f32.mxu0 0.0
        %585 = vmatmul.mubr.f32.gmra.mrb[0].mxu0 %v512
        %v586 = vpop.f32.mrb[0].mxu0
        %v587 = vadd.f32 %v507, %v586
        %v588 = vpop.f32.mrb[0].mxu0
        %v589 = vadd.f32 %v509, %v588
        %590 = vdwg.mxu0
        %591 = vrot.lane.b32.xlu0 %v379, 15
        %v592 = vpop.permute.xlu0 %591
        %593 = vrot.lane.b32.xlu0 %v380, 15
        %v594 = vpop.permute.xlu0 %593
        %vm595 = vcmp.lt.s32.totalorder %v382, 15
        %v596 = vsel %vm595, %v592, %v594
        %v597 = vsel %vm595, %v594, %v592
        %v598 = vsel %vm394, 1, 0
        %v599 = vsel %vm395, 1, 0
        %vm600 = vcmp.eq.s32.totalorder %v598, 1
        %vm601 = vcmp.eq.s32.totalorder %v599, 1
        %v602 = vsel %vm600, %v597, 0.0
        %v603 = vsel %vm601, %v596, 0.0
        %s604 = scalar_lea.vmem %s3, 8
        %v605 = vld [vmem:[%s604] sm:$0xf]
        %v607 = vsel %vm287, %v605, 0
        %v610 = vsel %vm291, %v602, 0
        %v613 = vsel %vm291, %v603, 0
        %615 = vmatprep.subr.mxu0 %v613
        %616 = vmatpush1.msra.mxu0 %v610
        %617 = vmatprep.subr.mxu0 0.0
        %618 = vmatpush1.msra.mxu0 0.0
        %619 = vmatprep.subr.mxu0 0.0
        %620 = vmatpush1.msra.mxu0 0.0
        %621 = vmatprep.subr.mxu0 0.0
        %622 = vmatpush1.msra.mxu0 0.0
        %623 = vmatprep.subr.mxu0 0.0
        %624 = vmatpush1.msra.mxu0 0.0
        %625 = vmatprep.subr.mxu0 0.0
        %626 = vmatpush1.msra.mxu0 0.0
        %627 = vmatprep.subr.mxu0 0.0
        %628 = vmatpush1.msra.mxu0 0.0
        %629 = vmatprep.subr.mxu0 0.0
        %630 = vmatpush1.msra.mxu0 0.0
        %631 = vmatprep.subr.mxu0 0.0
        %632 = vmatpush1.msra.mxu0 0.0
        %633 = vmatprep.subr.mxu0 0.0
        %634 = vmatpush1.msra.mxu0 0.0
        %635 = vmatprep.subr.mxu0 0.0
        %636 = vmatpush1.msra.mxu0 0.0
        %637 = vmatprep.subr.mxu0 0.0
        %638 = vmatpush1.msra.mxu0 0.0
        %639 = vmatprep.subr.mxu0 0.0
        %640 = vmatpush1.msra.mxu0 0.0
        %641 = vmatprep.subr.mxu0 0.0
        %642 = vmatpush1.msra.mxu0 0.0
        %643 = vmatprep.subr.mxu0 0.0
        %644 = vmatpush1.msra.mxu0 0.0
        %645 = vmatprep.subr.mxu0 0.0
        %646 = vmatpush1.msra.mxu0 0.0
        %647 = vmatprep.subr.mxu0 0.0
        %648 = vmatpush1.msra.mxu0 0.0
        %649 = vmatprep.subr.mxu0 0.0
        %650 = vmatpush1.msra.mxu0 0.0
        %651 = vmatprep.subr.mxu0 0.0
        %652 = vmatpush1.msra.mxu0 0.0
        %653 = vmatprep.subr.mxu0 0.0
        %654 = vmatpush1.msra.mxu0 0.0
        %655 = vmatprep.subr.mxu0 0.0
        %656 = vmatpush1.msra.mxu0 0.0
        %657 = vmatprep.subr.mxu0 0.0
        %658 = vmatpush1.msra.mxu0 0.0
        %659 = vmatprep.subr.mxu0 0.0
        %660 = vmatpush1.msra.mxu0 0.0
        %661 = vmatprep.subr.mxu0 0.0
        %662 = vmatpush1.msra.mxu0 0.0
        %663 = vmatprep.subr.mxu0 0.0
        %664 = vmatpush1.msra.mxu0 0.0
        %665 = vmatprep.subr.mxu0 0.0
        %666 = vmatpush1.msra.mxu0 0.0
        %667 = vmatprep.subr.mxu0 0.0
        %668 = vmatpush1.msra.mxu0 0.0
        %669 = vmatprep.subr.mxu0 0.0
        %670 = vmatpush1.msra.mxu0 0.0
        %671 = vmatprep.subr.mxu0 0.0
        %672 = vmatpush1.msra.mxu0 0.0
        %673 = vmatprep.subr.mxu0 0.0
        %674 = vmatpush1.msra.mxu0 0.0
        %675 = vmatprep.subr.mxu0 0.0
        %676 = vmatpush1.msra.mxu0 0.0
        %677 = vmatprep.subr.mxu0 0.0
        %678 = vmatpush1.msra.mxu0 0.0
        %679 = vmatprep.mubr.f32.mxu0 0.0
        %680 = vmatmul.mubr.f32.gmra.mrb[0].mxu0 %v607
        %v681 = vpop.f32.mrb[0].mxu0
        %v682 = vadd.f32 0.0, %v681
        %v683 = vpop.f32.mrb[0].mxu0
        %v684 = vadd.f32 0.0, %v683
        %685 = vdwg.mxu0
        %v686 = vadd.f32 %v587, %v682
        %v687 = vadd.f32 %v589, %v684
        %688 = vrot.lane.b32.xlu0 %v379, 1
        %v689 = vpop.permute.xlu0 %688
        %690 = vrot.lane.b32.xlu0 %v380, 1
        %v691 = vpop.permute.xlu0 %690
        %vm692 = vcmp.lt.s32.totalorder %v382, 1
        %v693 = vsel %vm692, %v689, %v691
        %v694 = vsel %vm692, %v691, %v689
        %v695 = vsel %vm388, 1, 0
        %v696 = vsel %vm389, 1, 0
        %vm697 = vcmp.eq.s32.totalorder %v695, 1
        %vm698 = vcmp.eq.s32.totalorder %v696, 1
        %v699 = vsel %vm697, %v694, 0.0
        %v700 = vsel %vm698, %v693, 0.0
        %s701 = scalar_lea.vmem %s3, 12
        %v702 = vld [vmem:[%s701] sm:$0xf]
        %v704 = vsel %vm287, %v702, 0
        %v707 = vsel %vm291, %v699, 0
        %v710 = vsel %vm291, %v700, 0
        %712 = vmatprep.subr.mxu0 %v710
        %713 = vmatpush1.msra.mxu0 %v707
        %714 = vmatprep.subr.mxu0 0.0
        %715 = vmatpush1.msra.mxu0 0.0
        %716 = vmatprep.subr.mxu0 0.0
        %717 = vmatpush1.msra.mxu0 0.0
        %718 = vmatprep.subr.mxu0 0.0
        %719 = vmatpush1.msra.mxu0 0.0
        %720 = vmatprep.subr.mxu0 0.0
        %721 = vmatpush1.msra.mxu0 0.0
        %722 = vmatprep.subr.mxu0 0.0
        %723 = vmatpush1.msra.mxu0 0.0
        %724 = vmatprep.subr.mxu0 0.0
        %725 = vmatpush1.msra.mxu0 0.0
        %726 = vmatprep.subr.mxu0 0.0
        %727 = vmatpush1.msra.mxu0 0.0
        %728 = vmatprep.subr.mxu0 0.0
        %729 = vmatpush1.msra.mxu0 0.0
        %730 = vmatprep.subr.mxu0 0.0
        %731 = vmatpush1.msra.mxu0 0.0
        %732 = vmatprep.subr.mxu0 0.0
        %733 = vmatpush1.msra.mxu0 0.0
        %734 = vmatprep.subr.mxu0 0.0
        %735 = vmatpush1.msra.mxu0 0.0
        %736 = vmatprep.subr.mxu0 0.0
        %737 = vmatpush1.msra.mxu0 0.0
        %738 = vmatprep.subr.mxu0 0.0
        %739 = vmatpush1.msra.mxu0 0.0
        %740 = vmatprep.subr.mxu0 0.0
        %741 = vmatpush1.msra.mxu0 0.0
        %742 = vmatprep.subr.mxu0 0.0
        %743 = vmatpush1.msra.mxu0 0.0
        %744 = vmatprep.subr.mxu0 0.0
        %745 = vmatpush1.msra.mxu0 0.0
        %746 = vmatprep.subr.mxu0 0.0
        %747 = vmatpush1.msra.mxu0 0.0
        %748 = vmatprep.subr.mxu0 0.0
        %749 = vmatpush1.msra.mxu0 0.0
        %750 = vmatprep.subr.mxu0 0.0
        %751 = vmatpush1.msra.mxu0 0.0
        %752 = vmatprep.subr.mxu0 0.0
        %753 = vmatpush1.msra.mxu0 0.0
        %754 = vmatprep.subr.mxu0 0.0
        %755 = vmatpush1.msra.mxu0 0.0
        %756 = vmatprep.subr.mxu0 0.0
        %757 = vmatpush1.msra.mxu0 0.0
        %758 = vmatprep.subr.mxu0 0.0
        %759 = vmatpush1.msra.mxu0 0.0
        %760 = vmatprep.subr.mxu0 0.0
        %761 = vmatpush1.msra.mxu0 0.0
        %762 = vmatprep.subr.mxu0 0.0
        %763 = vmatpush1.msra.mxu0 0.0
        %764 = vmatprep.subr.mxu0 0.0
        %765 = vmatpush1.msra.mxu0 0.0
        %766 = vmatprep.subr.mxu0 0.0
        %767 = vmatpush1.msra.mxu0 0.0
        %768 = vmatprep.subr.mxu0 0.0
        %769 = vmatpush1.msra.mxu0 0.0
        %770 = vmatprep.subr.mxu0 0.0
        %771 = vmatpush1.msra.mxu0 0.0
        %772 = vmatprep.subr.mxu0 0.0
        %773 = vmatpush1.msra.mxu0 0.0
        %774 = vmatprep.subr.mxu0 0.0
        %775 = vmatpush1.msra.mxu0 0.0
        %776 = vmatprep.mubr.f32.mxu0 0.0
        %777 = vmatmul.mubr.f32.gmra.mrb[0].mxu0 %v704
        %v778 = vpop.f32.mrb[0].mxu0
        %v779 = vadd.f32 0.0, %v778
        %v780 = vpop.f32.mrb[0].mxu0
        %v781 = vadd.f32 0.0, %v780
        %782 = vdwg.mxu0
        %v783 = vadd.f32 %v686, %v779
        %v784 = vadd.f32 %v687, %v781
        %s785 = scalar_lea.vmem %s3, 16
        %v786 = vld [vmem:[%s785] sm:$0xf]
        %v788 = vsel %vm287, %v786, 0
        %v791 = vsel %vm291, %v379, 0
        %v794 = vsel %vm291, %v380, 0
        %796 = vmatprep.subr.mxu0 %v794
        %797 = vmatpush1.msra.mxu0 %v791
        %798 = vmatprep.subr.mxu0 0.0
        %799 = vmatpush1.msra.mxu0 0.0
        %800 = vmatprep.subr.mxu0 0.0
        %801 = vmatpush1.msra.mxu0 0.0
        %802 = vmatprep.subr.mxu0 0.0
        %803 = vmatpush1.msra.mxu0 0.0
        %804 = vmatprep.subr.mxu0 0.0
        %805 = vmatpush1.msra.mxu0 0.0
        %806 = vmatprep.subr.mxu0 0.0
        %807 = vmatpush1.msra.mxu0 0.0
        %808 = vmatprep.subr.mxu0 0.0
        %809 = vmatpush1.msra.mxu0 0.0
        %810 = vmatprep.subr.mxu0 0.0
        %811 = vmatpush1.msra.mxu0 0.0
        %812 = vmatprep.subr.mxu0 0.0
        %813 = vmatpush1.msra.mxu0 0.0
        %814 = vmatprep.subr.mxu0 0.0
        %815 = vmatpush1.msra.mxu0 0.0
        %816 = vmatprep.subr.mxu0 0.0
        %817 = vmatpush1.msra.mxu0 0.0
        %818 = vmatprep.subr.mxu0 0.0
        %819 = vmatpush1.msra.mxu0 0.0
        %820 = vmatprep.subr.mxu0 0.0
        %821 = vmatpush1.msra.mxu0 0.0
        %822 = vmatprep.subr.mxu0 0.0
        %823 = vmatpush1.msra.mxu0 0.0
        %824 = vmatprep.subr.mxu0 0.0
        %825 = vmatpush1.msra.mxu0 0.0
        %826 = vmatprep.subr.mxu0 0.0
        %827 = vmatpush1.msra.mxu0 0.0
        %828 = vmatprep.subr.mxu0 0.0
        %829 = vmatpush1.msra.mxu0 0.0
        %830 = vmatprep.subr.mxu0 0.0
        %831 = vmatpush1.msra.mxu0 0.0
        %832 = vmatprep.subr.mxu0 0.0
        %833 = vmatpush1.msra.mxu0 0.0
        %834 = vmatprep.subr.mxu0 0.0
        %835 = vmatpush1.msra.mxu0 0.0
        %836 = vmatprep.subr.mxu0 0.0
        %837 = vmatpush1.msra.mxu0 0.0
        %838 = vmatprep.subr.mxu0 0.0
        %839 = vmatpush1.msra.mxu0 0.0
        %840 = vmatprep.subr.mxu0 0.0
        %841 = vmatpush1.msra.mxu0 0.0
        %842 = vmatprep.subr.mxu0 0.0
        %843 = vmatpush1.msra.mxu0 0.0
        %844 = vmatprep.subr.mxu0 0.0
        %845 = vmatpush1.msra.mxu0 0.0
        %846 = vmatprep.subr.mxu0 0.0
        %847 = vmatpush1.msra.mxu0 0.0
        %848 = vmatprep.subr.mxu0 0.0
        %849 = vmatpush1.msra.mxu0 0.0
        %850 = vmatprep.subr.mxu0 0.0
        %851 = vmatpush1.msra.mxu0 0.0
        %852 = vmatprep.subr.mxu0 0.0
        %853 = vmatpush1.msra.mxu0 0.0
        %854 = vmatprep.subr.mxu0 0.0
        %855 = vmatpush1.msra.mxu0 0.0
        %856 = vmatprep.subr.mxu0 0.0
        %857 = vmatpush1.msra.mxu0 0.0
        %858 = vmatprep.subr.mxu0 0.0
        %859 = vmatpush1.msra.mxu0 0.0
        %860 = vmatprep.mubr.f32.mxu0 0.0
        %861 = vmatmul.mubr.f32.gmra.mrb[0].mxu0 %v788
        %v862 = vpop.f32.mrb[0].mxu0
        %v863 = vadd.f32 0.0, %v862
        %v864 = vpop.f32.mrb[0].mxu0
        %v865 = vadd.f32 0.0, %v864
        %866 = vdwg.mxu0
        %v867 = vadd.f32 %v783, %v863
        %v868 = vadd.f32 %v784, %v865
        %869 = vrot.lane.b32.xlu0 %v379, 127
        %v870 = vpop.permute.xlu0 %869
        %871 = vrot.lane.b32.xlu0 %v380, 127
        %v872 = vpop.permute.xlu0 %871
        %vm873 = vcmp.lt.s32.totalorder %v382, 127
        %v874 = vsel %vm873, %v870, %v872
        %v875 = vsel %vm873, %v872, %v870
        %v876 = vsel %vm392, 1, 0
        %v877 = vsel %vm393, 1, 0
        %vm878 = vcmp.eq.s32.totalorder %v876, 1
        %vm879 = vcmp.eq.s32.totalorder %v877, 1
        %v880 = vsel %vm878, %v874, 0.0
        %v881 = vsel %vm879, %v875, 0.0
        %s882 = scalar_lea.vmem %s3, 20
        %v883 = vld [vmem:[%s882] sm:$0xf]
        %v885 = vsel %vm287, %v883, 0
        %v888 = vsel %vm291, %v880, 0
        %v891 = vsel %vm291, %v881, 0
        %893 = vmatprep.subr.mxu0 %v891
        %894 = vmatpush1.msra.mxu0 %v888
        %895 = vmatprep.subr.mxu0 0.0
        %896 = vmatpush1.msra.mxu0 0.0
        %897 = vmatprep.subr.mxu0 0.0
        %898 = vmatpush1.msra.mxu0 0.0
        %899 = vmatprep.subr.mxu0 0.0
        %900 = vmatpush1.msra.mxu0 0.0
        %901 = vmatprep.subr.mxu0 0.0
        %902 = vmatpush1.msra.mxu0 0.0
        %903 = vmatprep.subr.mxu0 0.0
        %904 = vmatpush1.msra.mxu0 0.0
        %905 = vmatprep.subr.mxu0 0.0
        %906 = vmatpush1.msra.mxu0 0.0
        %907 = vmatprep.subr.mxu0 0.0
        %908 = vmatpush1.msra.mxu0 0.0
        %909 = vmatprep.subr.mxu0 0.0
        %910 = vmatpush1.msra.mxu0 0.0
        %911 = vmatprep.subr.mxu0 0.0
        %912 = vmatpush1.msra.mxu0 0.0
        %913 = vmatprep.subr.mxu0 0.0
        %914 = vmatpush1.msra.mxu0 0.0
        %915 = vmatprep.subr.mxu0 0.0
        %916 = vmatpush1.msra.mxu0 0.0
        %917 = vmatprep.subr.mxu0 0.0
        %918 = vmatpush1.msra.mxu0 0.0
        %919 = vmatprep.subr.mxu0 0.0
        %920 = vmatpush1.msra.mxu0 0.0
        %921 = vmatprep.subr.mxu0 0.0
        %922 = vmatpush1.msra.mxu0 0.0
        %923 = vmatprep.subr.mxu0 0.0
        %924 = vmatpush1.msra.mxu0 0.0
        %925 = vmatprep.subr.mxu0 0.0
        %926 = vmatpush1.msra.mxu0 0.0
        %927 = vmatprep.subr.mxu0 0.0
        %928 = vmatpush1.msra.mxu0 0.0
        %929 = vmatprep.subr.mxu0 0.0
        %930 = vmatpush1.msra.mxu0 0.0
        %931 = vmatprep.subr.mxu0 0.0
        %932 = vmatpush1.msra.mxu0 0.0
        %933 = vmatprep.subr.mxu0 0.0
        %934 = vmatpush1.msra.mxu0 0.0
        %935 = vmatprep.subr.mxu0 0.0
        %936 = vmatpush1.msra.mxu0 0.0
        %937 = vmatprep.subr.mxu0 0.0
        %938 = vmatpush1.msra.mxu0 0.0
        %939 = vmatprep.subr.mxu0 0.0
        %940 = vmatpush1.msra.mxu0 0.0
        %941 = vmatprep.subr.mxu0 0.0
        %942 = vmatpush1.msra.mxu0 0.0
        %943 = vmatprep.subr.mxu0 0.0
        %944 = vmatpush1.msra.mxu0 0.0
        %945 = vmatprep.subr.mxu0 0.0
        %946 = vmatpush1.msra.mxu0 0.0
        %947 = vmatprep.subr.mxu0 0.0
        %948 = vmatpush1.msra.mxu0 0.0
        %949 = vmatprep.subr.mxu0 0.0
        %950 = vmatpush1.msra.mxu0 0.0
        %951 = vmatprep.subr.mxu0 0.0
        %952 = vmatpush1.msra.mxu0 0.0
        %953 = vmatprep.subr.mxu0 0.0
        %954 = vmatpush1.msra.mxu0 0.0
        %955 = vmatprep.subr.mxu0 0.0
        %956 = vmatpush1.msra.mxu0 0.0
        %957 = vmatprep.mubr.f32.mxu0 0.0
        %958 = vmatmul.mubr.f32.gmra.mrb[0].mxu0 %v885
        %v959 = vpop.f32.mrb[0].mxu0
        %v960 = vadd.f32 0.0, %v959
        %v961 = vpop.f32.mrb[0].mxu0
        %v962 = vadd.f32 0.0, %v961
        %963 = vdwg.mxu0
        %v964 = vadd.f32 %v867, %v960
        %v965 = vadd.f32 %v868, %v962
        %966 = vrot.lane.b32.xlu0 %v379, 113
        %v967 = vpop.permute.xlu0 %966
        %968 = vrot.lane.b32.xlu0 %v380, 113
        %v969 = vpop.permute.xlu0 %968
        %vm970 = vcmp.lt.s32.totalorder %v382, 113
        %v971 = vsel %vm970, %v967, %v969
        %v972 = vsel %vm970, %v969, %v967
        %v973 = vsel %vm398, 1, 0
        %v974 = vsel %vm399, 1, 0
        %vm975 = vcmp.eq.s32.totalorder %v973, 1
        %vm976 = vcmp.eq.s32.totalorder %v974, 1
        %v977 = vsel %vm975, %v971, 0.0
        %v978 = vsel %vm976, %v972, 0.0
        %s979 = scalar_lea.vmem %s3, 24
        %v980 = vld [vmem:[%s979] sm:$0xf]
        %v982 = vsel %vm287, %v980, 0
        %v985 = vsel %vm291, %v977, 0
        %v988 = vsel %vm291, %v978, 0
        %990 = vmatprep.subr.mxu0 %v988
        %991 = vmatpush1.msra.mxu0 %v985
        %992 = vmatprep.subr.mxu0 0.0
        %993 = vmatpush1.msra.mxu0 0.0
        %994 = vmatprep.subr.mxu0 0.0
        %995 = vmatpush1.msra.mxu0 0.0
        %996 = vmatprep.subr.mxu0 0.0
        %997 = vmatpush1.msra.mxu0 0.0
        %998 = vmatprep.subr.mxu0 0.0
        %999 = vmatpush1.msra.mxu0 0.0
        %1000 = vmatprep.subr.mxu0 0.0
        %1001 = vmatpush1.msra.mxu0 0.0
        %1002 = vmatprep.subr.mxu0 0.0
        %1003 = vmatpush1.msra.mxu0 0.0
        %1004 = vmatprep.subr.mxu0 0.0
        %1005 = vmatpush1.msra.mxu0 0.0
        %1006 = vmatprep.subr.mxu0 0.0
        %1007 = vmatpush1.msra.mxu0 0.0
        %1008 = vmatprep.subr.mxu0 0.0
        %1009 = vmatpush1.msra.mxu0 0.0
        %1010 = vmatprep.subr.mxu0 0.0
        %1011 = vmatpush1.msra.mxu0 0.0
        %1012 = vmatprep.subr.mxu0 0.0
        %1013 = vmatpush1.msra.mxu0 0.0
        %1014 = vmatprep.subr.mxu0 0.0
        %1015 = vmatpush1.msra.mxu0 0.0
        %1016 = vmatprep.subr.mxu0 0.0
        %1017 = vmatpush1.msra.mxu0 0.0
        %1018 = vmatprep.subr.mxu0 0.0
        %1019 = vmatpush1.msra.mxu0 0.0
        %1020 = vmatprep.subr.mxu0 0.0
        %1021 = vmatpush1.msra.mxu0 0.0
        %1022 = vmatprep.subr.mxu0 0.0
        %1023 = vmatpush1.msra.mxu0 0.0
        %1024 = vmatprep.subr.mxu0 0.0
        %1025 = vmatpush1.msra.mxu0 0.0
        %1026 = vmatprep.subr.mxu0 0.0
        %1027 = vmatpush1.msra.mxu0 0.0
        %1028 = vmatprep.subr.mxu0 0.0
        %1029 = vmatpush1.msra.mxu0 0.0
        %1030 = vmatprep.subr.mxu0 0.0
        %1031 = vmatpush1.msra.mxu0 0.0
        %1032 = vmatprep.subr.mxu0 0.0
        %1033 = vmatpush1.msra.mxu0 0.0
        %1034 = vmatprep.subr.mxu0 0.0
        %1035 = vmatpush1.msra.mxu0 0.0
        %1036 = vmatprep.subr.mxu0 0.0
        %1037 = vmatpush1.msra.mxu0 0.0
        %1038 = vmatprep.subr.mxu0 0.0
        %1039 = vmatpush1.msra.mxu0 0.0
        %1040 = vmatprep.subr.mxu0 0.0
        %1041 = vmatpush1.msra.mxu0 0.0
        %1042 = vmatprep.subr.mxu0 0.0
        %1043 = vmatpush1.msra.mxu0 0.0
        %1044 = vmatprep.subr.mxu0 0.0
        %1045 = vmatpush1.msra.mxu0 0.0
        %1046 = vmatprep.subr.mxu0 0.0
        %1047 = vmatpush1.msra.mxu0 0.0
        %1048 = vmatprep.subr.mxu0 0.0
        %1049 = vmatpush1.msra.mxu0 0.0
        %1050 = vmatprep.subr.mxu0 0.0
        %1051 = vmatpush1.msra.mxu0 0.0
        %1052 = vmatprep.subr.mxu0 0.0
        %1053 = vmatpush1.msra.mxu0 0.0
        %1054 = vmatprep.mubr.f32.mxu0 0.0
        %1055 = vmatmul.mubr.f32.gmra.mrb[0].mxu0 %v982
        %v1056 = vpop.f32.mrb[0].mxu0
        %v1057 = vadd.f32 0.0, %v1056
        %v1058 = vpop.f32.mrb[0].mxu0
        %v1059 = vadd.f32 0.0, %v1058
        %1060 = vdwg.mxu0
        %v1061 = vadd.f32 %v964, %v1057
        %v1062 = vadd.f32 %v965, %v1059
        %1063 = vrot.lane.b32.xlu0 %v379, 112
        %v1064 = vpop.permute.xlu0 %1063
        %1065 = vrot.lane.b32.xlu0 %v380, 112
        %v1066 = vpop.permute.xlu0 %1065
        %vm1067 = vcmp.lt.s32.totalorder %v382, 112
        %v1068 = vsel %vm1067, %v1064, %v1066
        %v1069 = vsel %vm1067, %v1066, %v1064
        %v1070 = vsel %vm396, 1, 0
        %v1071 = vsel %vm397, 1, 0
        %vm1072 = vcmp.eq.s32.totalorder %v1070, 1
        %vm1073 = vcmp.eq.s32.totalorder %v1071, 1
        %v1074 = vsel %vm1072, %v1068, 0.0
        %v1075 = vsel %vm1073, %v1069, 0.0
        %s1076 = scalar_lea.vmem %s3, 28
        %v1077 = vld [vmem:[%s1076] sm:$0xf]
        %v1079 = vsel %vm287, %v1077, 0
        %v1082 = vsel %vm291, %v1074, 0
        %v1085 = vsel %vm291, %v1075, 0
        %1087 = vmatprep.subr.mxu0 %v1085
        %1088 = vmatpush1.msra.mxu0 %v1082
        %1089 = vmatprep.subr.mxu0 0.0
        %1090 = vmatpush1.msra.mxu0 0.0
        %1091 = vmatprep.subr.mxu0 0.0
        %1092 = vmatpush1.msra.mxu0 0.0
        %1093 = vmatprep.subr.mxu0 0.0
        %1094 = vmatpush1.msra.mxu0 0.0
        %1095 = vmatprep.subr.mxu0 0.0
        %1096 = vmatpush1.msra.mxu0 0.0
        %1097 = vmatprep.subr.mxu0 0.0
        %1098 = vmatpush1.msra.mxu0 0.0
        %1099 = vmatprep.subr.mxu0 0.0
        %1100 = vmatpush1.msra.mxu0 0.0
        %1101 = vmatprep.subr.mxu0 0.0
        %1102 = vmatpush1.msra.mxu0 0.0
        %1103 = vmatprep.subr.mxu0 0.0
        %1104 = vmatpush1.msra.mxu0 0.0
        %1105 = vmatprep.subr.mxu0 0.0
        %1106 = vmatpush1.msra.mxu0 0.0
        %1107 = vmatprep.subr.mxu0 0.0
        %1108 = vmatpush1.msra.mxu0 0.0
        %1109 = vmatprep.subr.mxu0 0.0
        %1110 = vmatpush1.msra.mxu0 0.0
        %1111 = vmatprep.subr.mxu0 0.0
        %1112 = vmatpush1.msra.mxu0 0.0
        %1113 = vmatprep.subr.mxu0 0.0
        %1114 = vmatpush1.msra.mxu0 0.0
        %1115 = vmatprep.subr.mxu0 0.0
        %1116 = vmatpush1.msra.mxu0 0.0
        %1117 = vmatprep.subr.mxu0 0.0
        %1118 = vmatpush1.msra.mxu0 0.0
        %1119 = vmatprep.subr.mxu0 0.0
        %1120 = vmatpush1.msra.mxu0 0.0
        %1121 = vmatprep.subr.mxu0 0.0
        %1122 = vmatpush1.msra.mxu0 0.0
        %1123 = vmatprep.subr.mxu0 0.0
        %1124 = vmatpush1.msra.mxu0 0.0
        %1125 = vmatprep.subr.mxu0 0.0
        %1126 = vmatpush1.msra.mxu0 0.0
        %1127 = vmatprep.subr.mxu0 0.0
        %1128 = vmatpush1.msra.mxu0 0.0
        %1129 = vmatprep.subr.mxu0 0.0
        %1130 = vmatpush1.msra.mxu0 0.0
        %1131 = vmatprep.subr.mxu0 0.0
        %1132 = vmatpush1.msra.mxu0 0.0
        %1133 = vmatprep.subr.mxu0 0.0
        %1134 = vmatpush1.msra.mxu0 0.0
        %1135 = vmatprep.subr.mxu0 0.0
        %1136 = vmatpush1.msra.mxu0 0.0
        %1137 = vmatprep.subr.mxu0 0.0
        %1138 = vmatpush1.msra.mxu0 0.0
        %1139 = vmatprep.subr.mxu0 0.0
        %1140 = vmatpush1.msra.mxu0 0.0
        %1141 = vmatprep.subr.mxu0 0.0
        %1142 = vmatpush1.msra.mxu0 0.0
        %1143 = vmatprep.subr.mxu0 0.0
        %1144 = vmatpush1.msra.mxu0 0.0
        %1145 = vmatprep.subr.mxu0 0.0
        %1146 = vmatpush1.msra.mxu0 0.0
        %1147 = vmatprep.subr.mxu0 0.0
        %1148 = vmatpush1.msra.mxu0 0.0
        %1149 = vmatprep.subr.mxu0 0.0
        %1150 = vmatpush1.msra.mxu0 0.0
        %1151 = vmatprep.mubr.f32.mxu0 0.0
        %1152 = vmatmul.mubr.f32.gmra.mrb[0].mxu0 %v1079
        %v1153 = vpop.f32.mrb[0].mxu0
        %v1154 = vadd.f32 0.0, %v1153
        %v1155 = vpop.f32.mrb[0].mxu0
        %v1156 = vadd.f32 0.0, %v1155
        %1157 = vdwg.mxu0
        %v1158 = vadd.f32 %v1061, %v1154
        %v1159 = vadd.f32 %v1062, %v1156
        %1160 = vrot.lane.b32.xlu0 %v379, 111
        %v1161 = vpop.permute.xlu0 %1160
        %1162 = vrot.lane.b32.xlu0 %v380, 111
        %v1163 = vpop.permute.xlu0 %1162
        %vm1164 = vcmp.lt.s32.totalorder %v382, 111
        %v1165 = vsel %vm1164, %v1161, %v1163
        %v1166 = vsel %vm1164, %v1163, %v1161
        %v1167 = vsel %vm400, 1, 0
        %v1168 = vsel %vm401, 1, 0
        %vm1169 = vcmp.eq.s32.totalorder %v1167, 1
        %vm1170 = vcmp.eq.s32.totalorder %v1168, 1
        %v1171 = vsel %vm1169, %v1165, 0.0
        %v1172 = vsel %vm1170, %v1166, 0.0
        %s1173 = scalar_lea.vmem %s3, 32
        %v1174 = vld [vmem:[%s1173] sm:$0xf]
        %v1176 = vsel %vm287, %v1174, 0
        %v1179 = vsel %vm291, %v1171, 0
        %v1182 = vsel %vm291, %v1172, 0
        %1184 = vmatprep.subr.mxu0 %v1182
        %1185 = vmatpush1.msra.mxu0 %v1179
        %1186 = vmatprep.subr.mxu0 0.0
        %1187 = vmatpush1.msra.mxu0 0.0
        %1188 = vmatprep.subr.mxu0 0.0
        %1189 = vmatpush1.msra.mxu0 0.0
        %1190 = vmatprep.subr.mxu0 0.0
        %1191 = vmatpush1.msra.mxu0 0.0
        %1192 = vmatprep.subr.mxu0 0.0
        %1193 = vmatpush1.msra.mxu0 0.0
        %1194 = vmatprep.subr.mxu0 0.0
        %1195 = vmatpush1.msra.mxu0 0.0
        %1196 = vmatprep.subr.mxu0 0.0
        %1197 = vmatpush1.msra.mxu0 0.0
        %1198 = vmatprep.subr.mxu0 0.0
        %1199 = vmatpush1.msra.mxu0 0.0
        %1200 = vmatprep.subr.mxu0 0.0
        %1201 = vmatpush1.msra.mxu0 0.0
        %1202 = vmatprep.subr.mxu0 0.0
        %1203 = vmatpush1.msra.mxu0 0.0
        %1204 = vmatprep.subr.mxu0 0.0
        %1205 = vmatpush1.msra.mxu0 0.0
        %1206 = vmatprep.subr.mxu0 0.0
        %1207 = vmatpush1.msra.mxu0 0.0
        %1208 = vmatprep.subr.mxu0 0.0
        %1209 = vmatpush1.msra.mxu0 0.0
        %1210 = vmatprep.subr.mxu0 0.0
        %1211 = vmatpush1.msra.mxu0 0.0
        %1212 = vmatprep.subr.mxu0 0.0
        %1213 = vmatpush1.msra.mxu0 0.0
        %1214 = vmatprep.subr.mxu0 0.0
        %1215 = vmatpush1.msra.mxu0 0.0
        %1216 = vmatprep.subr.mxu0 0.0
        %1217 = vmatpush1.msra.mxu0 0.0
        %1218 = vmatprep.subr.mxu0 0.0
        %1219 = vmatpush1.msra.mxu0 0.0
        %1220 = vmatprep.subr.mxu0 0.0
        %1221 = vmatpush1.msra.mxu0 0.0
        %1222 = vmatprep.subr.mxu0 0.0
        %1223 = vmatpush1.msra.mxu0 0.0
        %1224 = vmatprep.subr.mxu0 0.0
        %1225 = vmatpush1.msra.mxu0 0.0
        %1226 = vmatprep.subr.mxu0 0.0
        %1227 = vmatpush1.msra.mxu0 0.0
        %1228 = vmatprep.subr.mxu0 0.0
        %1229 = vmatpush1.msra.mxu0 0.0
        %1230 = vmatprep.subr.mxu0 0.0
        %1231 = vmatpush1.msra.mxu0 0.0
        %1232 = vmatprep.subr.mxu0 0.0
        %1233 = vmatpush1.msra.mxu0 0.0
        %1234 = vmatprep.subr.mxu0 0.0
        %1235 = vmatpush1.msra.mxu0 0.0
        %1236 = vmatprep.subr.mxu0 0.0
        %1237 = vmatpush1.msra.mxu0 0.0
        %1238 = vmatprep.subr.mxu0 0.0
        %1239 = vmatpush1.msra.mxu0 0.0
        %1240 = vmatprep.subr.mxu0 0.0
        %1241 = vmatpush1.msra.mxu0 0.0
        %1242 = vmatprep.subr.mxu0 0.0
        %1243 = vmatpush1.msra.mxu0 0.0
        %1244 = vmatprep.subr.mxu0 0.0
        %1245 = vmatpush1.msra.mxu0 0.0
        %1246 = vmatprep.subr.mxu0 0.0
        %1247 = vmatpush1.msra.mxu0 0.0
        %1248 = vmatprep.mubr.f32.mxu0 0.0
        %1249 = vmatmul.mubr.f32.gmra.mrb[0].mxu0 %v1176
        %v1250 = vpop.f32.mrb[0].mxu0
        %v1251 = vadd.f32 0.0, %v1250
        %v1252 = vpop.f32.mrb[0].mxu0
        %v1253 = vadd.f32 0.0, %v1252
        %1254 = vdwg.mxu0
        %v1255 = vadd.f32 %v1158, %v1251
        %v1256 = vadd.f32 %v1159, %v1253
        %v1257 = vld [vmem:[%s4] sm:$0xf]
        %1259 = vset.pattern.permute.xlu0 0
        %1260 = vperm.xlu0 %1259, %v1257
        %v1261 = vpop.permute.xlu0 %1260
        %v1263 = vadd.f32 %v1255, %v1261
        %v1264 = vadd.f32 %v1256, %v1261
        %vm1265 = vcmp.gt.f32.partialorder %v1263, 0.0
        %vm1266 = vcmp.gt.f32.partialorder %v1264, 0.0
        %v1267 = vmul.f32 %v1263, 1.442695
        %v1268 = vpow.pop %v1267
        %v1269 = vmul.f32 %v1264, 1.442695
        %v1270 = vpow.pop %v1269
        %v1271 = vsub.f32 %v1268, 1.0
        %v1272 = vsub.f32 %v1270, 1.0
        %v1273 = vmul.f32 %v1271, 1.6732632
        %v1274 = vmul.f32 %v1272, 1.6732632
        %v1275 = vsel %vm1265, %v1263, %v1273
        %v1276 = vsel %vm1266, %v1264, %v1274
        %v1277 = vmul.f32 %v1275, 1.050701
        %v1278 = vmul.f32 %v1276, 1.050701
        %1279 = vrot.lane.b32.xlu0 %v1277, 17
        %v1280 = vpop.permute.xlu0 %1279
        %1281 = vrot.lane.b32.xlu0 %v1278, 17
        %v1282 = vpop.permute.xlu0 %1281
        %v1283 = vsel %vm406, %v1280, %v1282
        %v1284 = vsel %vm406, %v1282, %v1280
        %v1285 = vsel %vm411, %v1284, 0.0
        %v1286 = vsel %vm412, %v1283, 0.0
        %s1287 = scalar_lea.vmem %s3, 36
        %v1288 = vld [vmem:[%s1287] sm:$0xf]
        %1289 = vrot.lane.b32.xlu0 %v1277, 16
        %v1290 = vpop.permute.xlu0 %1289
        %1291 = vrot.lane.b32.xlu0 %v1278, 16
        %v1292 = vpop.permute.xlu0 %1291
        %v1293 = vsel %vm420, %v1290, %v1292
        %v1294 = vsel %vm420, %v1292, %v1290
        %v1295 = vsel %vm425, %v1294, 0.0
        %v1296 = vsel %vm426, %v1293, 0.0
        %s1297 = scalar_lea.vmem %s3, 40
        %v1298 = vld [vmem:[%s1297] sm:$0xf]
        %v1300 = vsel %vm287, %v1298, 0
        %v1303 = vsel %vm291, %v1295, 0
        %v1306 = vsel %vm291, %v1296, 0
        %1308 = vmatprep.subr.mxu0 %v1306
        %1309 = vmatpush1.msra.mxu0 %v1303
        %1310 = vmatprep.subr.mxu0 0.0
        %1311 = vmatpush1.msra.mxu0 0.0
        %1312 = vmatprep.subr.mxu0 0.0
        %1313 = vmatpush1.msra.mxu0 0.0
        %1314 = vmatprep.subr.mxu0 0.0
        %1315 = vmatpush1.msra.mxu0 0.0
        %1316 = vmatprep.subr.mxu0 0.0
        %1317 = vmatpush1.msra.mxu0 0.0
        %1318 = vmatprep.subr.mxu0 0.0
        %1319 = vmatpush1.msra.mxu0 0.0
        %1320 = vmatprep.subr.mxu0 0.0
        %1321 = vmatpush1.msra.mxu0 0.0
        %1322 = vmatprep.subr.mxu0 0.0
        %1323 = vmatpush1.msra.mxu0 0.0
        %1324 = vmatprep.subr.mxu0 0.0
        %1325 = vmatpush1.msra.mxu0 0.0
        %1326 = vmatprep.subr.mxu0 0.0
        %1327 = vmatpush1.msra.mxu0 0.0
        %1328 = vmatprep.subr.mxu0 0.0
        %1329 = vmatpush1.msra.mxu0 0.0
        %1330 = vmatprep.subr.mxu0 0.0
        %1331 = vmatpush1.msra.mxu0 0.0
        %1332 = vmatprep.subr.mxu0 0.0
        %1333 = vmatpush1.msra.mxu0 0.0
        %1334 = vmatprep.subr.mxu0 0.0
        %1335 = vmatpush1.msra.mxu0 0.0
        %1336 = vmatprep.subr.mxu0 0.0
        %1337 = vmatpush1.msra.mxu0 0.0
        %1338 = vmatprep.subr.mxu0 0.0
        %1339 = vmatpush1.msra.mxu0 0.0
        %1340 = vmatprep.subr.mxu0 0.0
        %1341 = vmatpush1.msra.mxu0 0.0
        %1342 = vmatprep.subr.mxu0 0.0
        %1343 = vmatpush1.msra.mxu0 0.0
        %1344 = vmatprep.subr.mxu0 0.0
        %1345 = vmatpush1.msra.mxu0 0.0
        %1346 = vmatprep.subr.mxu0 0.0
        %1347 = vmatpush1.msra.mxu0 0.0
        %1348 = vmatprep.subr.mxu0 0.0
        %1349 = vmatpush1.msra.mxu0 0.0
        %1350 = vmatprep.subr.mxu0 0.0
        %1351 = vmatpush1.msra.mxu0 0.0
        %1352 = vmatprep.subr.mxu0 0.0
        %1353 = vmatpush1.msra.mxu0 0.0
        %1354 = vmatprep.subr.mxu0 0.0
        %1355 = vmatpush1.msra.mxu0 0.0
        %1356 = vmatprep.subr.mxu0 0.0
        %1357 = vmatpush1.msra.mxu0 0.0
        %1358 = vmatprep.subr.mxu0 0.0
        %1359 = vmatpush1.msra.mxu0 0.0
        %1360 = vmatprep.subr.mxu0 0.0
        %1361 = vmatpush1.msra.mxu0 0.0
        %1362 = vmatprep.subr.mxu0 0.0
        %1363 = vmatpush1.msra.mxu0 0.0
        %1364 = vmatprep.subr.mxu0 0.0
        %1365 = vmatpush1.msra.mxu0 0.0
        %1366 = vmatprep.subr.mxu0 0.0
        %1367 = vmatpush1.msra.mxu0 0.0
        %1368 = vmatprep.subr.mxu0 0.0
        %1369 = vmatpush1.msra.mxu0 0.0
        %1370 = vmatprep.subr.mxu0 0.0
        %1371 = vmatpush1.msra.mxu0 0.0
        %1372 = vmatprep.mubr.f32.mxu0 0.0
        %1373 = vmatmul.mubr.f32.gmra.mrb[0].mxu0 %v1300
        %v1374 = vpop.f32.mrb[0].mxu0
        %v1375 = vadd.f32 0.0, %v1374
        %v1376 = vpop.f32.mrb[0].mxu0
        %v1377 = vadd.f32 0.0, %v1376
        %1378 = vdwg.mxu0
        %v1380 = vsel %vm287, %v1288, 0
        %v1383 = vsel %vm291, %v1285, 0
        %v1386 = vsel %vm291, %v1286, 0
        %1388 = vmatprep.subr.mxu0 %v1386
        %1389 = vmatpush1.msra.mxu0 %v1383
        %1390 = vmatprep.subr.mxu0 0.0
        %1391 = vmatpush1.msra.mxu0 0.0
        %1392 = vmatprep.subr.mxu0 0.0
        %1393 = vmatpush1.msra.mxu0 0.0
        %1394 = vmatprep.subr.mxu0 0.0
        %1395 = vmatpush1.msra.mxu0 0.0
        %1396 = vmatprep.subr.mxu0 0.0
        %1397 = vmatpush1.msra.mxu0 0.0
        %1398 = vmatprep.subr.mxu0 0.0
        %1399 = vmatpush1.msra.mxu0 0.0
        %1400 = vmatprep.subr.mxu0 0.0
        %1401 = vmatpush1.msra.mxu0 0.0
        %1402 = vmatprep.subr.mxu0 0.0
        %1403 = vmatpush1.msra.mxu0 0.0
        %1404 = vmatprep.subr.mxu0 0.0
        %1405 = vmatpush1.msra.mxu0 0.0
        %1406 = vmatprep.subr.mxu0 0.0
        %1407 = vmatpush1.msra.mxu0 0.0
        %1408 = vmatprep.subr.mxu0 0.0
        %1409 = vmatpush1.msra.mxu0 0.0
        %1410 = vmatprep.subr.mxu0 0.0
        %1411 = vmatpush1.msra.mxu0 0.0
        %1412 = vmatprep.subr.mxu0 0.0
        %1413 = vmatpush1.msra.mxu0 0.0
        %1414 = vmatprep.subr.mxu0 0.0
        %1415 = vmatpush1.msra.mxu0 0.0
        %1416 = vmatprep.subr.mxu0 0.0
        %1417 = vmatpush1.msra.mxu0 0.0
        %1418 = vmatprep.subr.mxu0 0.0
        %1419 = vmatpush1.msra.mxu0 0.0
        %1420 = vmatprep.subr.mxu0 0.0
        %1421 = vmatpush1.msra.mxu0 0.0
        %1422 = vmatprep.subr.mxu0 0.0
        %1423 = vmatpush1.msra.mxu0 0.0
        %1424 = vmatprep.subr.mxu0 0.0
        %1425 = vmatpush1.msra.mxu0 0.0
        %1426 = vmatprep.subr.mxu0 0.0
        %1427 = vmatpush1.msra.mxu0 0.0
        %1428 = vmatprep.subr.mxu0 0.0
        %1429 = vmatpush1.msra.mxu0 0.0
        %1430 = vmatprep.subr.mxu0 0.0
        %1431 = vmatpush1.msra.mxu0 0.0
        %1432 = vmatprep.subr.mxu0 0.0
        %1433 = vmatpush1.msra.mxu0 0.0
        %1434 = vmatprep.subr.mxu0 0.0
        %1435 = vmatpush1.msra.mxu0 0.0
        %1436 = vmatprep.subr.mxu0 0.0
        %1437 = vmatpush1.msra.mxu0 0.0
        %1438 = vmatprep.subr.mxu0 0.0
        %1439 = vmatpush1.msra.mxu0 0.0
        %1440 = vmatprep.subr.mxu0 0.0
        %1441 = vmatpush1.msra.mxu0 0.0
        %1442 = vmatprep.subr.mxu0 0.0
        %1443 = vmatpush1.msra.mxu0 0.0
        %1444 = vmatprep.subr.mxu0 0.0
        %1445 = vmatpush1.msra.mxu0 0.0
        %1446 = vmatprep.subr.mxu0 0.0
        %1447 = vmatpush1.msra.mxu0 0.0
        %1448 = vmatprep.subr.mxu0 0.0
        %1449 = vmatpush1.msra.mxu0 0.0
        %1450 = vmatprep.subr.mxu0 0.0
        %1451 = vmatpush1.msra.mxu0 0.0
        %1452 = vmatprep.mubr.f32.mxu0 0.0
        %1453 = vmatmul.mubr.f32.gmra.mrb[0].mxu0 %v1380
        %v1454 = vpop.f32.mrb[0].mxu0
        %v1455 = vadd.f32 %v1375, %v1454
        %v1456 = vpop.f32.mrb[0].mxu0
        %v1457 = vadd.f32 %v1377, %v1456
        %1458 = vdwg.mxu0
        %1459 = vrot.lane.b32.xlu0 %v1277, 15
        %v1460 = vpop.permute.xlu0 %1459
        %1461 = vrot.lane.b32.xlu0 %v1278, 15
        %v1462 = vpop.permute.xlu0 %1461
        %v1463 = vsel %vm595, %v1460, %v1462
        %v1464 = vsel %vm595, %v1462, %v1460
        %v1465 = vsel %vm600, %v1464, 0.0
        %v1466 = vsel %vm601, %v1463, 0.0
        %s1467 = scalar_lea.vmem %s3, 44
        %v1468 = vld [vmem:[%s1467] sm:$0xf]
        %v1470 = vsel %vm287, %v1468, 0
        %v1473 = vsel %vm291, %v1465, 0
        %v1476 = vsel %vm291, %v1466, 0
        %1478 = vmatprep.subr.mxu0 %v1476
        %1479 = vmatpush1.msra.mxu0 %v1473
        %1480 = vmatprep.subr.mxu0 0.0
        %1481 = vmatpush1.msra.mxu0 0.0
        %1482 = vmatprep.subr.mxu0 0.0
        %1483 = vmatpush1.msra.mxu0 0.0
        %1484 = vmatprep.subr.mxu0 0.0
        %1485 = vmatpush1.msra.mxu0 0.0
        %1486 = vmatprep.subr.mxu0 0.0
        %1487 = vmatpush1.msra.mxu0 0.0
        %1488 = vmatprep.subr.mxu0 0.0
        %1489 = vmatpush1.msra.mxu0 0.0
        %1490 = vmatprep.subr.mxu0 0.0
        %1491 = vmatpush1.msra.mxu0 0.0
        %1492 = vmatprep.subr.mxu0 0.0
        %1493 = vmatpush1.msra.mxu0 0.0
        %1494 = vmatprep.subr.mxu0 0.0
        %1495 = vmatpush1.msra.mxu0 0.0
        %1496 = vmatprep.subr.mxu0 0.0
        %1497 = vmatpush1.msra.mxu0 0.0
        %1498 = vmatprep.subr.mxu0 0.0
        %1499 = vmatpush1.msra.mxu0 0.0
        %1500 = vmatprep.subr.mxu0 0.0
        %1501 = vmatpush1.msra.mxu0 0.0
        %1502 = vmatprep.subr.mxu0 0.0
        %1503 = vmatpush1.msra.mxu0 0.0
        %1504 = vmatprep.subr.mxu0 0.0
        %1505 = vmatpush1.msra.mxu0 0.0
        %1506 = vmatprep.subr.mxu0 0.0
        %1507 = vmatpush1.msra.mxu0 0.0
        %1508 = vmatprep.subr.mxu0 0.0
        %1509 = vmatpush1.msra.mxu0 0.0
        %1510 = vmatprep.subr.mxu0 0.0
        %1511 = vmatpush1.msra.mxu0 0.0
        %1512 = vmatprep.subr.mxu0 0.0
        %1513 = vmatpush1.msra.mxu0 0.0
        %1514 = vmatprep.subr.mxu0 0.0
        %1515 = vmatpush1.msra.mxu0 0.0
        %1516 = vmatprep.subr.mxu0 0.0
        %1517 = vmatpush1.msra.mxu0 0.0
        %1518 = vmatprep.subr.mxu0 0.0
        %1519 = vmatpush1.msra.mxu0 0.0
        %1520 = vmatprep.subr.mxu0 0.0
        %1521 = vmatpush1.msra.mxu0 0.0
        %1522 = vmatprep.subr.mxu0 0.0
        %1523 = vmatpush1.msra.mxu0 0.0
        %1524 = vmatprep.subr.mxu0 0.0
        %1525 = vmatpush1.msra.mxu0 0.0
        %1526 = vmatprep.subr.mxu0 0.0
        %1527 = vmatpush1.msra.mxu0 0.0
        %1528 = vmatprep.subr.mxu0 0.0
        %1529 = vmatpush1.msra.mxu0 0.0
        %1530 = vmatprep.subr.mxu0 0.0
        %1531 = vmatpush1.msra.mxu0 0.0
        %1532 = vmatprep.subr.mxu0 0.0
        %1533 = vmatpush1.msra.mxu0 0.0
        %1534 = vmatprep.subr.mxu0 0.0
        %1535 = vmatpush1.msra.mxu0 0.0
        %1536 = vmatprep.subr.mxu0 0.0
        %1537 = vmatpush1.msra.mxu0 0.0
        %1538 = vmatprep.subr.mxu0 0.0
        %1539 = vmatpush1.msra.mxu0 0.0
        %1540 = vmatprep.subr.mxu0 0.0
        %1541 = vmatpush1.msra.mxu0 0.0
        %1542 = vmatprep.mubr.f32.mxu0 0.0
        %1543 = vmatmul.mubr.f32.gmra.mrb[0].mxu0 %v1470
        %v1544 = vpop.f32.mrb[0].mxu0
        %v1545 = vadd.f32 0.0, %v1544
        %v1546 = vpop.f32.mrb[0].mxu0
        %v1547 = vadd.f32 0.0, %v1546
        %1548 = vdwg.mxu0
        %v1549 = vadd.f32 %v1455, %v1545
        %v1550 = vadd.f32 %v1457, %v1547
        %1551 = vrot.lane.b32.xlu0 %v1277, 1
        %v1552 = vpop.permute.xlu0 %1551
        %1553 = vrot.lane.b32.xlu0 %v1278, 1
        %v1554 = vpop.permute.xlu0 %1553
        %v1555 = vsel %vm692, %v1552, %v1554
        %v1556 = vsel %vm692, %v1554, %v1552
        %v1557 = vsel %vm697, %v1556, 0.0
        %v1558 = vsel %vm698, %v1555, 0.0
        %s1559 = scalar_lea.vmem %s3, 48
        %v1560 = vld [vmem:[%s1559] sm:$0xf]
        %v1562 = vsel %vm287, %v1560, 0
        %v1565 = vsel %vm291, %v1557, 0
        %v1568 = vsel %vm291, %v1558, 0
        %1570 = vmatprep.subr.mxu0 %v1568
        %1571 = vmatpush1.msra.mxu0 %v1565
        %1572 = vmatprep.subr.mxu0 0.0
        %1573 = vmatpush1.msra.mxu0 0.0
        %1574 = vmatprep.subr.mxu0 0.0
        %1575 = vmatpush1.msra.mxu0 0.0
        %1576 = vmatprep.subr.mxu0 0.0
        %1577 = vmatpush1.msra.mxu0 0.0
        %1578 = vmatprep.subr.mxu0 0.0
        %1579 = vmatpush1.msra.mxu0 0.0
        %1580 = vmatprep.subr.mxu0 0.0
        %1581 = vmatpush1.msra.mxu0 0.0
        %1582 = vmatprep.subr.mxu0 0.0
        %1583 = vmatpush1.msra.mxu0 0.0
        %1584 = vmatprep.subr.mxu0 0.0
        %1585 = vmatpush1.msra.mxu0 0.0
        %1586 = vmatprep.subr.mxu0 0.0
        %1587 = vmatpush1.msra.mxu0 0.0
        %1588 = vmatprep.subr.mxu0 0.0
        %1589 = vmatpush1.msra.mxu0 0.0
        %1590 = vmatprep.subr.mxu0 0.0
        %1591 = vmatpush1.msra.mxu0 0.0
        %1592 = vmatprep.subr.mxu0 0.0
        %1593 = vmatpush1.msra.mxu0 0.0
        %1594 = vmatprep.subr.mxu0 0.0
        %1595 = vmatpush1.msra.mxu0 0.0
        %1596 = vmatprep.subr.mxu0 0.0
        %1597 = vmatpush1.msra.mxu0 0.0
        %1598 = vmatprep.subr.mxu0 0.0
        %1599 = vmatpush1.msra.mxu0 0.0
        %1600 = vmatprep.subr.mxu0 0.0
        %1601 = vmatpush1.msra.mxu0 0.0
        %1602 = vmatprep.subr.mxu0 0.0
        %1603 = vmatpush1.msra.mxu0 0.0
        %1604 = vmatprep.subr.mxu0 0.0
        %1605 = vmatpush1.msra.mxu0 0.0
        %1606 = vmatprep.subr.mxu0 0.0
        %1607 = vmatpush1.msra.mxu0 0.0
        %1608 = vmatprep.subr.mxu0 0.0
        %1609 = vmatpush1.msra.mxu0 0.0
        %1610 = vmatprep.subr.mxu0 0.0
        %1611 = vmatpush1.msra.mxu0 0.0
        %1612 = vmatprep.subr.mxu0 0.0
        %1613 = vmatpush1.msra.mxu0 0.0
        %1614 = vmatprep.subr.mxu0 0.0
        %1615 = vmatpush1.msra.mxu0 0.0
        %1616 = vmatprep.subr.mxu0 0.0
        %1617 = vmatpush1.msra.mxu0 0.0
        %1618 = vmatprep.subr.mxu0 0.0
        %1619 = vmatpush1.msra.mxu0 0.0
        %1620 = vmatprep.subr.mxu0 0.0
        %1621 = vmatpush1.msra.mxu0 0.0
        %1622 = vmatprep.subr.mxu0 0.0
        %1623 = vmatpush1.msra.mxu0 0.0
        %1624 = vmatprep.subr.mxu0 0.0
        %1625 = vmatpush1.msra.mxu0 0.0
        %1626 = vmatprep.subr.mxu0 0.0
        %1627 = vmatpush1.msra.mxu0 0.0
        %1628 = vmatprep.subr.mxu0 0.0
        %1629 = vmatpush1.msra.mxu0 0.0
        %1630 = vmatprep.subr.mxu0 0.0
        %1631 = vmatpush1.msra.mxu0 0.0
        %1632 = vmatprep.subr.mxu0 0.0
        %1633 = vmatpush1.msra.mxu0 0.0
        %1634 = vmatprep.mubr.f32.mxu0 0.0
        %1635 = vmatmul.mubr.f32.gmra.mrb[0].mxu0 %v1562
        %v1636 = vpop.f32.mrb[0].mxu0
        %v1637 = vadd.f32 0.0, %v1636
        %v1638 = vpop.f32.mrb[0].mxu0
        %v1639 = vadd.f32 0.0, %v1638
        %1640 = vdwg.mxu0
        %v1641 = vadd.f32 %v1549, %v1637
        %v1642 = vadd.f32 %v1550, %v1639
        %s1643 = scalar_lea.vmem %s3, 52
        %v1644 = vld [vmem:[%s1643] sm:$0xf]
        %v1646 = vsel %vm287, %v1644, 0
        %v1649 = vsel %vm291, %v1277, 0
        %v1652 = vsel %vm291, %v1278, 0
        %1654 = vmatprep.subr.mxu0 %v1652
        %1655 = vmatpush1.msra.mxu0 %v1649
        %1656 = vmatprep.subr.mxu0 0.0
        %1657 = vmatpush1.msra.mxu0 0.0
        %1658 = vmatprep.subr.mxu0 0.0
        %1659 = vmatpush1.msra.mxu0 0.0
        %1660 = vmatprep.subr.mxu0 0.0
        %1661 = vmatpush1.msra.mxu0 0.0
        %1662 = vmatprep.subr.mxu0 0.0
        %1663 = vmatpush1.msra.mxu0 0.0
        %1664 = vmatprep.subr.mxu0 0.0
        %1665 = vmatpush1.msra.mxu0 0.0
        %1666 = vmatprep.subr.mxu0 0.0
        %1667 = vmatpush1.msra.mxu0 0.0
        %1668 = vmatprep.subr.mxu0 0.0
        %1669 = vmatpush1.msra.mxu0 0.0
        %1670 = vmatprep.subr.mxu0 0.0
        %1671 = vmatpush1.msra.mxu0 0.0
        %1672 = vmatprep.subr.mxu0 0.0
        %1673 = vmatpush1.msra.mxu0 0.0
        %1674 = vmatprep.subr.mxu0 0.0
        %1675 = vmatpush1.msra.mxu0 0.0
        %1676 = vmatprep.subr.mxu0 0.0
        %1677 = vmatpush1.msra.mxu0 0.0
        %1678 = vmatprep.subr.mxu0 0.0
        %1679 = vmatpush1.msra.mxu0 0.0
        %1680 = vmatprep.subr.mxu0 0.0
        %1681 = vmatpush1.msra.mxu0 0.0
        %1682 = vmatprep.subr.mxu0 0.0
        %1683 = vmatpush1.msra.mxu0 0.0
        %1684 = vmatprep.subr.mxu0 0.0
        %1685 = vmatpush1.msra.mxu0 0.0
        %1686 = vmatprep.subr.mxu0 0.0
        %1687 = vmatpush1.msra.mxu0 0.0
        %1688 = vmatprep.subr.mxu0 0.0
        %1689 = vmatpush1.msra.mxu0 0.0
        %1690 = vmatprep.subr.mxu0 0.0
        %1691 = vmatpush1.msra.mxu0 0.0
        %1692 = vmatprep.subr.mxu0 0.0
        %1693 = vmatpush1.msra.mxu0 0.0
        %1694 = vmatprep.subr.mxu0 0.0
        %1695 = vmatpush1.msra.mxu0 0.0
        %1696 = vmatprep.subr.mxu0 0.0
        %1697 = vmatpush1.msra.mxu0 0.0
        %1698 = vmatprep.subr.mxu0 0.0
        %1699 = vmatpush1.msra.mxu0 0.0
        %1700 = vmatprep.subr.mxu0 0.0
        %1701 = vmatpush1.msra.mxu0 0.0
        %1702 = vmatprep.subr.mxu0 0.0
        %1703 = vmatpush1.msra.mxu0 0.0
        %1704 = vmatprep.subr.mxu0 0.0
        %1705 = vmatpush1.msra.mxu0 0.0
        %1706 = vmatprep.subr.mxu0 0.0
        %1707 = vmatpush1.msra.mxu0 0.0
        %1708 = vmatprep.subr.mxu0 0.0
        %1709 = vmatpush1.msra.mxu0 0.0
        %1710 = vmatprep.subr.mxu0 0.0
        %1711 = vmatpush1.msra.mxu0 0.0
        %1712 = vmatprep.subr.mxu0 0.0
        %1713 = vmatpush1.msra.mxu0 0.0
        %1714 = vmatprep.subr.mxu0 0.0
        %1715 = vmatpush1.msra.mxu0 0.0
        %1716 = vmatprep.subr.mxu0 0.0
        %1717 = vmatpush1.msra.mxu0 0.0
        %1718 = vmatprep.mubr.f32.mxu0 0.0
        %1719 = vmatmul.mubr.f32.gmra.mrb[0].mxu0 %v1646
        %v1720 = vpop.f32.mrb[0].mxu0
        %v1721 = vadd.f32 0.0, %v1720
        %v1722 = vpop.f32.mrb[0].mxu0
        %v1723 = vadd.f32 0.0, %v1722
        %1724 = vdwg.mxu0
        %v1725 = vadd.f32 %v1641, %v1721
        %v1726 = vadd.f32 %v1642, %v1723
        %1727 = vrot.lane.b32.xlu0 %v1277, 127
        %v1728 = vpop.permute.xlu0 %1727
        %1729 = vrot.lane.b32.xlu0 %v1278, 127
        %v1730 = vpop.permute.xlu0 %1729
        %v1731 = vsel %vm873, %v1728, %v1730
        %v1732 = vsel %vm873, %v1730, %v1728
        %v1733 = vsel %vm878, %v1731, 0.0
        %v1734 = vsel %vm879, %v1732, 0.0
        %s1735 = scalar_lea.vmem %s3, 56
        %v1736 = vld [vmem:[%s1735] sm:$0xf]
        %v1738 = vsel %vm287, %v1736, 0
        %v1741 = vsel %vm291, %v1733, 0
        %v1744 = vsel %vm291, %v1734, 0
        %1746 = vmatprep.subr.mxu0 %v1744
        %1747 = vmatpush1.msra.mxu0 %v1741
        %1748 = vmatprep.subr.mxu0 0.0
        %1749 = vmatpush1.msra.mxu0 0.0
        %1750 = vmatprep.subr.mxu0 0.0
        %1751 = vmatpush1.msra.mxu0 0.0
        %1752 = vmatprep.subr.mxu0 0.0
        %1753 = vmatpush1.msra.mxu0 0.0
        %1754 = vmatprep.subr.mxu0 0.0
        %1755 = vmatpush1.msra.mxu0 0.0
        %1756 = vmatprep.subr.mxu0 0.0
        %1757 = vmatpush1.msra.mxu0 0.0
        %1758 = vmatprep.subr.mxu0 0.0
        %1759 = vmatpush1.msra.mxu0 0.0
        %1760 = vmatprep.subr.mxu0 0.0
        %1761 = vmatpush1.msra.mxu0 0.0
        %1762 = vmatprep.subr.mxu0 0.0
        %1763 = vmatpush1.msra.mxu0 0.0
        %1764 = vmatprep.subr.mxu0 0.0
        %1765 = vmatpush1.msra.mxu0 0.0
        %1766 = vmatprep.subr.mxu0 0.0
        %1767 = vmatpush1.msra.mxu0 0.0
        %1768 = vmatprep.subr.mxu0 0.0
        %1769 = vmatpush1.msra.mxu0 0.0
        %1770 = vmatprep.subr.mxu0 0.0
        %1771 = vmatpush1.msra.mxu0 0.0
        %1772 = vmatprep.subr.mxu0 0.0
        %1773 = vmatpush1.msra.mxu0 0.0
        %1774 = vmatprep.subr.mxu0 0.0
        %1775 = vmatpush1.msra.mxu0 0.0
        %1776 = vmatprep.subr.mxu0 0.0
        %1777 = vmatpush1.msra.mxu0 0.0
        %1778 = vmatprep.subr.mxu0 0.0
        %1779 = vmatpush1.msra.mxu0 0.0
        %1780 = vmatprep.subr.mxu0 0.0
        %1781 = vmatpush1.msra.mxu0 0.0
        %1782 = vmatprep.subr.mxu0 0.0
        %1783 = vmatpush1.msra.mxu0 0.0
        %1784 = vmatprep.subr.mxu0 0.0
        %1785 = vmatpush1.msra.mxu0 0.0
        %1786 = vmatprep.subr.mxu0 0.0
        %1787 = vmatpush1.msra.mxu0 0.0
        %1788 = vmatprep.subr.mxu0 0.0
        %1789 = vmatpush1.msra.mxu0 0.0
        %1790 = vmatprep.subr.mxu0 0.0
        %1791 = vmatpush1.msra.mxu0 0.0
        %1792 = vmatprep.subr.mxu0 0.0
        %1793 = vmatpush1.msra.mxu0 0.0
        %1794 = vmatprep.subr.mxu0 0.0
        %1795 = vmatpush1.msra.mxu0 0.0
        %1796 = vmatprep.subr.mxu0 0.0
        %1797 = vmatpush1.msra.mxu0 0.0
        %1798 = vmatprep.subr.mxu0 0.0
        %1799 = vmatpush1.msra.mxu0 0.0
        %1800 = vmatprep.subr.mxu0 0.0
        %1801 = vmatpush1.msra.mxu0 0.0
        %1802 = vmatprep.subr.mxu0 0.0
        %1803 = vmatpush1.msra.mxu0 0.0
        %1804 = vmatprep.subr.mxu0 0.0
        %1805 = vmatpush1.msra.mxu0 0.0
        %1806 = vmatprep.subr.mxu0 0.0
        %1807 = vmatpush1.msra.mxu0 0.0
        %1808 = vmatprep.subr.mxu0 0.0
        %1809 = vmatpush1.msra.mxu0 0.0
        %1810 = vmatprep.mubr.f32.mxu0 0.0
        %1811 = vmatmul.mubr.f32.gmra.mrb[0].mxu0 %v1738
        %v1812 = vpop.f32.mrb[0].mxu0
        %v1813 = vadd.f32 0.0, %v1812
        %v1814 = vpop.f32.mrb[0].mxu0
        %v1815 = vadd.f32 0.0, %v1814
        %1816 = vdwg.mxu0
        %v1817 = vadd.f32 %v1725, %v1813
        %v1818 = vadd.f32 %v1726, %v1815
        %1819 = vrot.lane.b32.xlu0 %v1277, 113
        %v1820 = vpop.permute.xlu0 %1819
        %1821 = vrot.lane.b32.xlu0 %v1278, 113
        %v1822 = vpop.permute.xlu0 %1821
        %v1823 = vsel %vm970, %v1820, %v1822
        %v1824 = vsel %vm970, %v1822, %v1820
        %v1825 = vsel %vm975, %v1823, 0.0
        %v1826 = vsel %vm976, %v1824, 0.0
        %s1827 = scalar_lea.vmem %s3, 60
        %v1828 = vld [vmem:[%s1827] sm:$0xf]
        %v1830 = vsel %vm287, %v1828, 0
        %v1833 = vsel %vm291, %v1825, 0
        %v1836 = vsel %vm291, %v1826, 0
        %1838 = vmatprep.subr.mxu0 %v1836
        %1839 = vmatpush1.msra.mxu0 %v1833
        %1840 = vmatprep.subr.mxu0 0.0
        %1841 = vmatpush1.msra.mxu0 0.0
        %1842 = vmatprep.subr.mxu0 0.0
        %1843 = vmatpush1.msra.mxu0 0.0
        %1844 = vmatprep.subr.mxu0 0.0
        %1845 = vmatpush1.msra.mxu0 0.0
        %1846 = vmatprep.subr.mxu0 0.0
        %1847 = vmatpush1.msra.mxu0 0.0
        %1848 = vmatprep.subr.mxu0 0.0
        %1849 = vmatpush1.msra.mxu0 0.0
        %1850 = vmatprep.subr.mxu0 0.0
        %1851 = vmatpush1.msra.mxu0 0.0
        %1852 = vmatprep.subr.mxu0 0.0
        %1853 = vmatpush1.msra.mxu0 0.0
        %1854 = vmatprep.subr.mxu0 0.0
        %1855 = vmatpush1.msra.mxu0 0.0
        %1856 = vmatprep.subr.mxu0 0.0
        %1857 = vmatpush1.msra.mxu0 0.0
        %1858 = vmatprep.subr.mxu0 0.0
        %1859 = vmatpush1.msra.mxu0 0.0
        %1860 = vmatprep.subr.mxu0 0.0
        %1861 = vmatpush1.msra.mxu0 0.0
        %1862 = vmatprep.subr.mxu0 0.0
        %1863 = vmatpush1.msra.mxu0 0.0
        %1864 = vmatprep.subr.mxu0 0.0
        %1865 = vmatpush1.msra.mxu0 0.0
        %1866 = vmatprep.subr.mxu0 0.0
        %1867 = vmatpush1.msra.mxu0 0.0
        %1868 = vmatprep.subr.mxu0 0.0
        %1869 = vmatpush1.msra.mxu0 0.0
        %1870 = vmatprep.subr.mxu0 0.0
        %1871 = vmatpush1.msra.mxu0 0.0
        %1872 = vmatprep.subr.mxu0 0.0
        %1873 = vmatpush1.msra.mxu0 0.0
        %1874 = vmatprep.subr.mxu0 0.0
        %1875 = vmatpush1.msra.mxu0 0.0
        %1876 = vmatprep.subr.mxu0 0.0
        %1877 = vmatpush1.msra.mxu0 0.0
        %1878 = vmatprep.subr.mxu0 0.0
        %1879 = vmatpush1.msra.mxu0 0.0
        %1880 = vmatprep.subr.mxu0 0.0
        %1881 = vmatpush1.msra.mxu0 0.0
        %1882 = vmatprep.subr.mxu0 0.0
        %1883 = vmatpush1.msra.mxu0 0.0
        %1884 = vmatprep.subr.mxu0 0.0
        %1885 = vmatpush1.msra.mxu0 0.0
        %1886 = vmatprep.subr.mxu0 0.0
        %1887 = vmatpush1.msra.mxu0 0.0
        %1888 = vmatprep.subr.mxu0 0.0
        %1889 = vmatpush1.msra.mxu0 0.0
        %1890 = vmatprep.subr.mxu0 0.0
        %1891 = vmatpush1.msra.mxu0 0.0
        %1892 = vmatprep.subr.mxu0 0.0
        %1893 = vmatpush1.msra.mxu0 0.0
        %1894 = vmatprep.subr.mxu0 0.0
        %1895 = vmatpush1.msra.mxu0 0.0
        %1896 = vmatprep.subr.mxu0 0.0
        %1897 = vmatpush1.msra.mxu0 0.0
        %1898 = vmatprep.subr.mxu0 0.0
        %1899 = vmatpush1.msra.mxu0 0.0
        %1900 = vmatprep.subr.mxu0 0.0
        %1901 = vmatpush1.msra.mxu0 0.0
        %1902 = vmatprep.mubr.f32.mxu0 0.0
        %1903 = vmatmul.mubr.f32.gmra.mrb[0].mxu0 %v1830
        %v1904 = vpop.f32.mrb[0].mxu0
        %v1905 = vadd.f32 0.0, %v1904
        %v1906 = vpop.f32.mrb[0].mxu0
        %v1907 = vadd.f32 0.0, %v1906
        %1908 = vdwg.mxu0
        %v1909 = vadd.f32 %v1817, %v1905
        %v1910 = vadd.f32 %v1818, %v1907
        %1911 = vrot.lane.b32.xlu0 %v1277, 112
        %v1912 = vpop.permute.xlu0 %1911
        %1913 = vrot.lane.b32.xlu0 %v1278, 112
        %v1914 = vpop.permute.xlu0 %1913
        %v1915 = vsel %vm1067, %v1912, %v1914
        %v1916 = vsel %vm1067, %v1914, %v1912
        %v1917 = vsel %vm1072, %v1915, 0.0
        %v1918 = vsel %vm1073, %v1916, 0.0
        %s1919 = scalar_lea.vmem %s3, 64
        %v1920 = vld [vmem:[%s1919] sm:$0xf]
        %v1922 = vsel %vm287, %v1920, 0
        %v1925 = vsel %vm291, %v1917, 0
        %v1928 = vsel %vm291, %v1918, 0
        %1930 = vmatprep.subr.mxu0 %v1928
        %1931 = vmatpush1.msra.mxu0 %v1925
        %1932 = vmatprep.subr.mxu0 0.0
        %1933 = vmatpush1.msra.mxu0 0.0
        %1934 = vmatprep.subr.mxu0 0.0
        %1935 = vmatpush1.msra.mxu0 0.0
        %1936 = vmatprep.subr.mxu0 0.0
        %1937 = vmatpush1.msra.mxu0 0.0
        %1938 = vmatprep.subr.mxu0 0.0
        %1939 = vmatpush1.msra.mxu0 0.0
        %1940 = vmatprep.subr.mxu0 0.0
        %1941 = vmatpush1.msra.mxu0 0.0
        %1942 = vmatprep.subr.mxu0 0.0
        %1943 = vmatpush1.msra.mxu0 0.0
        %1944 = vmatprep.subr.mxu0 0.0
        %1945 = vmatpush1.msra.mxu0 0.0
        %1946 = vmatprep.subr.mxu0 0.0
        %1947 = vmatpush1.msra.mxu0 0.0
        %1948 = vmatprep.subr.mxu0 0.0
        %1949 = vmatpush1.msra.mxu0 0.0
        %1950 = vmatprep.subr.mxu0 0.0
        %1951 = vmatpush1.msra.mxu0 0.0
        %1952 = vmatprep.subr.mxu0 0.0
        %1953 = vmatpush1.msra.mxu0 0.0
        %1954 = vmatprep.subr.mxu0 0.0
        %1955 = vmatpush1.msra.mxu0 0.0
        %1956 = vmatprep.subr.mxu0 0.0
        %1957 = vmatpush1.msra.mxu0 0.0
        %1958 = vmatprep.subr.mxu0 0.0
        %1959 = vmatpush1.msra.mxu0 0.0
        %1960 = vmatprep.subr.mxu0 0.0
        %1961 = vmatpush1.msra.mxu0 0.0
        %1962 = vmatprep.subr.mxu0 0.0
        %1963 = vmatpush1.msra.mxu0 0.0
        %1964 = vmatprep.subr.mxu0 0.0
        %1965 = vmatpush1.msra.mxu0 0.0
        %1966 = vmatprep.subr.mxu0 0.0
        %1967 = vmatpush1.msra.mxu0 0.0
        %1968 = vmatprep.subr.mxu0 0.0
        %1969 = vmatpush1.msra.mxu0 0.0
        %1970 = vmatprep.subr.mxu0 0.0
        %1971 = vmatpush1.msra.mxu0 0.0
        %1972 = vmatprep.subr.mxu0 0.0
        %1973 = vmatpush1.msra.mxu0 0.0
        %1974 = vmatprep.subr.mxu0 0.0
        %1975 = vmatpush1.msra.mxu0 0.0
        %1976 = vmatprep.subr.mxu0 0.0
        %1977 = vmatpush1.msra.mxu0 0.0
        %1978 = vmatprep.subr.mxu0 0.0
        %1979 = vmatpush1.msra.mxu0 0.0
        %1980 = vmatprep.subr.mxu0 0.0
        %1981 = vmatpush1.msra.mxu0 0.0
        %1982 = vmatprep.subr.mxu0 0.0
        %1983 = vmatpush1.msra.mxu0 0.0
        %1984 = vmatprep.subr.mxu0 0.0
        %1985 = vmatpush1.msra.mxu0 0.0
        %1986 = vmatprep.subr.mxu0 0.0
        %1987 = vmatpush1.msra.mxu0 0.0
        %1988 = vmatprep.subr.mxu0 0.0
        %1989 = vmatpush1.msra.mxu0 0.0
        %1990 = vmatprep.subr.mxu0 0.0
        %1991 = vmatpush1.msra.mxu0 0.0
        %1992 = vmatprep.subr.mxu0 0.0
        %1993 = vmatpush1.msra.mxu0 0.0
        %1994 = vmatprep.mubr.f32.mxu0 0.0
        %1995 = vmatmul.mubr.f32.gmra.mrb[0].mxu0 %v1922
        %v1996 = vpop.f32.mrb[0].mxu0
        %v1997 = vadd.f32 0.0, %v1996
        %v1998 = vpop.f32.mrb[0].mxu0
        %v1999 = vadd.f32 0.0, %v1998
        %2000 = vdwg.mxu0
        %v2001 = vadd.f32 %v1909, %v1997
        %v2002 = vadd.f32 %v1910, %v1999
        %2003 = vrot.lane.b32.xlu0 %v1277, 111
        %v2004 = vpop.permute.xlu0 %2003
        %2005 = vrot.lane.b32.xlu0 %v1278, 111
        %v2006 = vpop.permute.xlu0 %2005
        %v2007 = vsel %vm1164, %v2004, %v2006
        %v2008 = vsel %vm1164, %v2006, %v2004
        %v2009 = vsel %vm1169, %v2007, 0.0
        %v2010 = vsel %vm1170, %v2008, 0.0
        %s2011 = scalar_lea.vmem %s3, 68
        %v2012 = vld [vmem:[%s2011] sm:$0xf]
        %v2014 = vsel %vm287, %v2012, 0
        %v2017 = vsel %vm291, %v2009, 0
        %v2020 = vsel %vm291, %v2010, 0
        %2022 = vmatprep.subr.mxu0 %v2020
        %2023 = vmatpush1.msra.mxu0 %v2017
        %2024 = vmatprep.subr.mxu0 0.0
        %2025 = vmatpush1.msra.mxu0 0.0
        %2026 = vmatprep.subr.mxu0 0.0
        %2027 = vmatpush1.msra.mxu0 0.0
        %2028 = vmatprep.subr.mxu0 0.0
        %2029 = vmatpush1.msra.mxu0 0.0
        %2030 = vmatprep.subr.mxu0 0.0
        %2031 = vmatpush1.msra.mxu0 0.0
        %2032 = vmatprep.subr.mxu0 0.0
        %2033 = vmatpush1.msra.mxu0 0.0
        %2034 = vmatprep.subr.mxu0 0.0
        %2035 = vmatpush1.msra.mxu0 0.0
        %2036 = vmatprep.subr.mxu0 0.0
        %2037 = vmatpush1.msra.mxu0 0.0
        %2038 = vmatprep.subr.mxu0 0.0
        %2039 = vmatpush1.msra.mxu0 0.0
        %2040 = vmatprep.subr.mxu0 0.0
        %2041 = vmatpush1.msra.mxu0 0.0
        %2042 = vmatprep.subr.mxu0 0.0
        %2043 = vmatpush1.msra.mxu0 0.0
        %2044 = vmatprep.subr.mxu0 0.0
        %2045 = vmatpush1.msra.mxu0 0.0
        %2046 = vmatprep.subr.mxu0 0.0
        %2047 = vmatpush1.msra.mxu0 0.0
        %2048 = vmatprep.subr.mxu0 0.0
        %2049 = vmatpush1.msra.mxu0 0.0
        %2050 = vmatprep.subr.mxu0 0.0
        %2051 = vmatpush1.msra.mxu0 0.0
        %2052 = vmatprep.subr.mxu0 0.0
        %2053 = vmatpush1.msra.mxu0 0.0
        %2054 = vmatprep.subr.mxu0 0.0
        %2055 = vmatpush1.msra.mxu0 0.0
        %2056 = vmatprep.subr.mxu0 0.0
        %2057 = vmatpush1.msra.mxu0 0.0
        %2058 = vmatprep.subr.mxu0 0.0
        %2059 = vmatpush1.msra.mxu0 0.0
        %2060 = vmatprep.subr.mxu0 0.0
        %2061 = vmatpush1.msra.mxu0 0.0
        %2062 = vmatprep.subr.mxu0 0.0
        %2063 = vmatpush1.msra.mxu0 0.0
        %2064 = vmatprep.subr.mxu0 0.0
        %2065 = vmatpush1.msra.mxu0 0.0
        %2066 = vmatprep.subr.mxu0 0.0
        %2067 = vmatpush1.msra.mxu0 0.0
        %2068 = vmatprep.subr.mxu0 0.0
        %2069 = vmatpush1.msra.mxu0 0.0
        %2070 = vmatprep.subr.mxu0 0.0
        %2071 = vmatpush1.msra.mxu0 0.0
        %2072 = vmatprep.subr.mxu0 0.0
        %2073 = vmatpush1.msra.mxu0 0.0
        %2074 = vmatprep.subr.mxu0 0.0
        %2075 = vmatpush1.msra.mxu0 0.0
        %2076 = vmatprep.subr.mxu0 0.0
        %2077 = vmatpush1.msra.mxu0 0.0
        %2078 = vmatprep.subr.mxu0 0.0
        %2079 = vmatpush1.msra.mxu0 0.0
        %2080 = vmatprep.subr.mxu0 0.0
        %2081 = vmatpush1.msra.mxu0 0.0
        %2082 = vmatprep.subr.mxu0 0.0
        %2083 = vmatpush1.msra.mxu0 0.0
        %2084 = vmatprep.subr.mxu0 0.0
        %2085 = vmatpush1.msra.mxu0 0.0
        %2086 = vmatprep.mubr.f32.mxu0 0.0
        %2087 = vmatmul.mubr.f32.gmra.mrb[0].mxu0 %v2014
        %v2088 = vpop.f32.mrb[0].mxu0
        %v2089 = vadd.f32 0.0, %v2088
        %v2090 = vpop.f32.mrb[0].mxu0
        %v2091 = vadd.f32 0.0, %v2090
        %2092 = vdwg.mxu0
        %v2093 = vadd.f32 %v2001, %v2089
        %v2094 = vadd.f32 %v2002, %v2091
        %s2095 = scalar_lea.vmem %s4, 4
        %v2096 = vld [vmem:[%s2095] sm:$0xf]
        %2098 = vset.pattern.permute.xlu0 0
        %2099 = vperm.xlu0 %2098, %v2096
        %v2100 = vpop.permute.xlu0 %2099
        %v2102 = vadd.f32 %v2093, %v2100
        %v2103 = vadd.f32 %v2094, %v2100
        %vm2104 = vcmp.gt.f32.partialorder %v2102, 0.0
        %vm2105 = vcmp.gt.f32.partialorder %v2103, 0.0
        %v2106 = vmul.f32 %v2102, 1.442695
        %v2107 = vpow.pop %v2106
        %v2108 = vmul.f32 %v2103, 1.442695
        %v2109 = vpow.pop %v2108
        %v2110 = vsub.f32 %v2107, 1.0
        %v2111 = vsub.f32 %v2109, 1.0
        %v2112 = vmul.f32 %v2110, 1.6732632
        %v2113 = vmul.f32 %v2111, 1.6732632
        %v2114 = vsel %vm2104, %v2102, %v2112
        %v2115 = vsel %vm2105, %v2103, %v2113
        %v2116 = vmul.f32 %v2114, 1.050701
        %v2117 = vmul.f32 %v2115, 1.050701
        %v2118 = vld [vmem:[%s5] sm:$0xff]
        %2120 = vrot.lane.b32.xlu0 %v2118, 124
        %v2121 = vpop.permute.xlu0 %2120
        %v2122 = vsel %vm287, %v2121, 0
        %v2125 = vsel %vm291, %v2116, 0
        %v2128 = vsel %vm291, %v2117, 0
        %2130 = vmatprep.subr.mxu0 %v2128
        %2131 = vmatpush1.msra.mxu0 %v2125
        %2132 = vmatprep.subr.mxu0 0.0
        %2133 = vmatpush1.msra.mxu0 0.0
        %2134 = vmatprep.subr.mxu0 0.0
        %2135 = vmatpush1.msra.mxu0 0.0
        %2136 = vmatprep.subr.mxu0 0.0
        %2137 = vmatpush1.msra.mxu0 0.0
        %2138 = vmatprep.subr.mxu0 0.0
        %2139 = vmatpush1.msra.mxu0 0.0
        %2140 = vmatprep.subr.mxu0 0.0
        %2141 = vmatpush1.msra.mxu0 0.0
        %2142 = vmatprep.subr.mxu0 0.0
        %2143 = vmatpush1.msra.mxu0 0.0
        %2144 = vmatprep.subr.mxu0 0.0
        %2145 = vmatpush1.msra.mxu0 0.0
        %2146 = vmatprep.subr.mxu0 0.0
        %2147 = vmatpush1.msra.mxu0 0.0
        %2148 = vmatprep.subr.mxu0 0.0
        %2149 = vmatpush1.msra.mxu0 0.0
        %2150 = vmatprep.subr.mxu0 0.0
        %2151 = vmatpush1.msra.mxu0 0.0
        %2152 = vmatprep.subr.mxu0 0.0
        %2153 = vmatpush1.msra.mxu0 0.0
        %2154 = vmatprep.subr.mxu0 0.0
        %2155 = vmatpush1.msra.mxu0 0.0
        %2156 = vmatprep.subr.mxu0 0.0
        %2157 = vmatpush1.msra.mxu0 0.0
        %2158 = vmatprep.subr.mxu0 0.0
        %2159 = vmatpush1.msra.mxu0 0.0
        %2160 = vmatprep.subr.mxu0 0.0
        %2161 = vmatpush1.msra.mxu0 0.0
        %2162 = vmatprep.subr.mxu0 0.0
        %2163 = vmatpush1.msra.mxu0 0.0
        %2164 = vmatprep.subr.mxu0 0.0
        %2165 = vmatpush1.msra.mxu0 0.0
        %2166 = vmatprep.subr.mxu0 0.0
        %2167 = vmatpush1.msra.mxu0 0.0
        %2168 = vmatprep.subr.mxu0 0.0
        %2169 = vmatpush1.msra.mxu0 0.0
        %2170 = vmatprep.subr.mxu0 0.0
        %2171 = vmatpush1.msra.mxu0 0.0
        %2172 = vmatprep.subr.mxu0 0.0
        %2173 = vmatpush1.msra.mxu0 0.0
        %2174 = vmatprep.subr.mxu0 0.0
        %2175 = vmatpush1.msra.mxu0 0.0
        %2176 = vmatprep.subr.mxu0 0.0
        %2177 = vmatpush1.msra.mxu0 0.0
        %2178 = vmatprep.subr.mxu0 0.0
        %2179 = vmatpush1.msra.mxu0 0.0
        %2180 = vmatprep.subr.mxu0 0.0
        %2181 = vmatpush1.msra.mxu0 0.0
        %2182 = vmatprep.subr.mxu0 0.0
        %2183 = vmatpush1.msra.mxu0 0.0
        %2184 = vmatprep.subr.mxu0 0.0
        %2185 = vmatpush1.msra.mxu0 0.0
        %2186 = vmatprep.subr.mxu0 0.0
        %2187 = vmatpush1.msra.mxu0 0.0
        %2188 = vmatprep.subr.mxu0 0.0
        %2189 = vmatpush1.msra.mxu0 0.0
        %2190 = vmatprep.subr.mxu0 0.0
        %2191 = vmatpush1.msra.mxu0 0.0
        %2192 = vmatprep.subr.mxu0 0.0
        %2193 = vmatpush1.msra.mxu0 0.0
        %2194 = vmatprep.mubr.f32.mxu0 0.0
        %2195 = vmatmul.mubr.f32.gmra.mrb[0].mxu0 %v2122
        %v2196 = vpop.f32.mrb[0].mxu0
        %v2197 = vadd.f32 0.0, %v2196
        %v2198 = vpop.f32.mrb[0].mxu0
        %v2199 = vadd.f32 0.0, %v2198
        %2200 = vdwg.mxu0
        %v2201 = vsel %vm287, %v2118, 0
        %2203 = vmatprep.subr.mxu0 %v794
        %2204 = vmatpush1.msra.mxu0 %v791
        %2205 = vmatprep.subr.mxu0 0.0
        %2206 = vmatpush1.msra.mxu0 0.0
        %2207 = vmatprep.subr.mxu0 0.0
        %2208 = vmatpush1.msra.mxu0 0.0
        %2209 = vmatprep.subr.mxu0 0.0
        %2210 = vmatpush1.msra.mxu0 0.0
        %2211 = vmatprep.subr.mxu0 0.0
        %2212 = vmatpush1.msra.mxu0 0.0
        %2213 = vmatprep.subr.mxu0 0.0
        %2214 = vmatpush1.msra.mxu0 0.0
        %2215 = vmatprep.subr.mxu0 0.0
        %2216 = vmatpush1.msra.mxu0 0.0
        %2217 = vmatprep.subr.mxu0 0.0
        %2218 = vmatpush1.msra.mxu0 0.0
        %2219 = vmatprep.subr.mxu0 0.0
        %2220 = vmatpush1.msra.mxu0 0.0
        %2221 = vmatprep.subr.mxu0 0.0
        %2222 = vmatpush1.msra.mxu0 0.0
        %2223 = vmatprep.subr.mxu0 0.0
        %2224 = vmatpush1.msra.mxu0 0.0
        %2225 = vmatprep.subr.mxu0 0.0
        %2226 = vmatpush1.msra.mxu0 0.0
        %2227 = vmatprep.subr.mxu0 0.0
        %2228 = vmatpush1.msra.mxu0 0.0
        %2229 = vmatprep.subr.mxu0 0.0
        %2230 = vmatpush1.msra.mxu0 0.0
        %2231 = vmatprep.subr.mxu0 0.0
        %2232 = vmatpush1.msra.mxu0 0.0
        %2233 = vmatprep.subr.mxu0 0.0
        %2234 = vmatpush1.msra.mxu0 0.0
        %2235 = vmatprep.subr.mxu0 0.0
        %2236 = vmatpush1.msra.mxu0 0.0
        %2237 = vmatprep.subr.mxu0 0.0
        %2238 = vmatpush1.msra.mxu0 0.0
        %2239 = vmatprep.subr.mxu0 0.0
        %2240 = vmatpush1.msra.mxu0 0.0
        %2241 = vmatprep.subr.mxu0 0.0
        %2242 = vmatpush1.msra.mxu0 0.0
        %2243 = vmatprep.subr.mxu0 0.0
        %2244 = vmatpush1.msra.mxu0 0.0
        %2245 = vmatprep.subr.mxu0 0.0
        %2246 = vmatpush1.msra.mxu0 0.0
        %2247 = vmatprep.subr.mxu0 0.0
        %2248 = vmatpush1.msra.mxu0 0.0
        %2249 = vmatprep.subr.mxu0 0.0
        %2250 = vmatpush1.msra.mxu0 0.0
        %2251 = vmatprep.subr.mxu0 0.0
        %2252 = vmatpush1.msra.mxu0 0.0
        %2253 = vmatprep.subr.mxu0 0.0
        %2254 = vmatpush1.msra.mxu0 0.0
        %2255 = vmatprep.subr.mxu0 0.0
        %2256 = vmatpush1.msra.mxu0 0.0
        %2257 = vmatprep.subr.mxu0 0.0
        %2258 = vmatpush1.msra.mxu0 0.0
        %2259 = vmatprep.subr.mxu0 0.0
        %2260 = vmatpush1.msra.mxu0 0.0
        %2261 = vmatprep.subr.mxu0 0.0
        %2262 = vmatpush1.msra.mxu0 0.0
        %2263 = vmatprep.subr.mxu0 0.0
        %2264 = vmatpush1.msra.mxu0 0.0
        %2265 = vmatprep.subr.mxu0 0.0
        %2266 = vmatpush1.msra.mxu0 0.0
        %2267 = vmatprep.mubr.f32.mxu0 0.0
        %2268 = vmatmul.mubr.f32.gmra.mrb[0].mxu0 %v2201
        %v2269 = vpop.f32.mrb[0].mxu0
        %v2270 = vadd.f32 %v2197, %v2269
        %v2271 = vpop.f32.mrb[0].mxu0
        %v2272 = vadd.f32 %v2199, %v2271
        %2273 = vdwg.mxu0
        %2274 = vrot.lane.b32.xlu0 %v2118, 120
        %v2275 = vpop.permute.xlu0 %2274
        %v2276 = vrot.slane %v379, 4
        %v2277 = vrot.slane %v380, 4
        %v2278 = vsel %vm287, %v2275, 0
        %v2280 = vsel %vm291, %v2276, 0
        %v2282 = vsel %vm291, %v2277, 0
        %2284 = vmatprep.subr.mxu0 %v2282
        %2285 = vmatpush1.msra.mxu0 %v2280
        %2286 = vmatprep.subr.mxu0 0.0
        %2287 = vmatpush1.msra.mxu0 0.0
        %2288 = vmatprep.subr.mxu0 0.0
        %2289 = vmatpush1.msra.mxu0 0.0
        %2290 = vmatprep.subr.mxu0 0.0
        %2291 = vmatpush1.msra.mxu0 0.0
        %2292 = vmatprep.subr.mxu0 0.0
        %2293 = vmatpush1.msra.mxu0 0.0
        %2294 = vmatprep.subr.mxu0 0.0
        %2295 = vmatpush1.msra.mxu0 0.0
        %2296 = vmatprep.subr.mxu0 0.0
        %2297 = vmatpush1.msra.mxu0 0.0
        %2298 = vmatprep.subr.mxu0 0.0
        %2299 = vmatpush1.msra.mxu0 0.0
        %2300 = vmatprep.subr.mxu0 0.0
        %2301 = vmatpush1.msra.mxu0 0.0
        %2302 = vmatprep.subr.mxu0 0.0
        %2303 = vmatpush1.msra.mxu0 0.0
        %2304 = vmatprep.subr.mxu0 0.0
        %2305 = vmatpush1.msra.mxu0 0.0
        %2306 = vmatprep.subr.mxu0 0.0
        %2307 = vmatpush1.msra.mxu0 0.0
        %2308 = vmatprep.subr.mxu0 0.0
        %2309 = vmatpush1.msra.mxu0 0.0
        %2310 = vmatprep.subr.mxu0 0.0
        %2311 = vmatpush1.msra.mxu0 0.0
        %2312 = vmatprep.subr.mxu0 0.0
        %2313 = vmatpush1.msra.mxu0 0.0
        %2314 = vmatprep.subr.mxu0 0.0
        %2315 = vmatpush1.msra.mxu0 0.0
        %2316 = vmatprep.subr.mxu0 0.0
        %2317 = vmatpush1.msra.mxu0 0.0
        %2318 = vmatprep.subr.mxu0 0.0
        %2319 = vmatpush1.msra.mxu0 0.0
        %2320 = vmatprep.subr.mxu0 0.0
        %2321 = vmatpush1.msra.mxu0 0.0
        %2322 = vmatprep.subr.mxu0 0.0
        %2323 = vmatpush1.msra.mxu0 0.0
        %2324 = vmatprep.subr.mxu0 0.0
        %2325 = vmatpush1.msra.mxu0 0.0
        %2326 = vmatprep.subr.mxu0 0.0
        %2327 = vmatpush1.msra.mxu0 0.0
        %2328 = vmatprep.subr.mxu0 0.0
        %2329 = vmatpush1.msra.mxu0 0.0
        %2330 = vmatprep.subr.mxu0 0.0
        %2331 = vmatpush1.msra.mxu0 0.0
        %2332 = vmatprep.subr.mxu0 0.0
        %2333 = vmatpush1.msra.mxu0 0.0
        %2334 = vmatprep.subr.mxu0 0.0
        %2335 = vmatpush1.msra.mxu0 0.0
        %2336 = vmatprep.subr.mxu0 0.0
        %2337 = vmatpush1.msra.mxu0 0.0
        %2338 = vmatprep.subr.mxu0 0.0
        %2339 = vmatpush1.msra.mxu0 0.0
        %2340 = vmatprep.subr.mxu0 0.0
        %2341 = vmatpush1.msra.mxu0 0.0
        %2342 = vmatprep.subr.mxu0 0.0
        %2343 = vmatpush1.msra.mxu0 0.0
        %2344 = vmatprep.subr.mxu0 0.0
        %2345 = vmatpush1.msra.mxu0 0.0
        %2346 = vmatprep.subr.mxu0 0.0
        %2347 = vmatpush1.msra.mxu0 0.0
        %2348 = vmatprep.mubr.f32.mxu0 0.0
        %2349 = vmatmul.mubr.f32.gmra.mrb[0].mxu0 %v2278
        %v2350 = vpop.f32.mrb[0].mxu0
        %v2351 = vadd.f32 0.0, %v2350
        %v2352 = vpop.f32.mrb[0].mxu0
        %v2353 = vadd.f32 0.0, %v2352
        %2354 = vdwg.mxu0
        %v2355 = vadd.f32 %v2270, %v2351
        %v2356 = vadd.f32 %v2272, %v2353
        %v2357 = vld [vmem:[%s6] sm:$0xff]
        %2359 = vset.pattern.permute.xlu0 0
        %2360 = vperm.xlu0 %2359, %v2357
        %v2361 = vpop.permute.xlu0 %2360
        %v2363 = vadd.f32 %v2355, %v2361
        %v2364 = vadd.f32 %v2356, %v2361
        %vm2365 = vcmp.gt.f32.partialorder %v2363, 0.0
        %vm2366 = vcmp.gt.f32.partialorder %v2364, 0.0
        %v2367 = vmul.f32 %v2363, 1.442695
        %v2368 = vpow.pop %v2367
        %v2369 = vmul.f32 %v2364, 1.442695
        %v2370 = vpow.pop %v2369
        %v2371 = vsub.f32 %v2368, 1.0
        %v2372 = vsub.f32 %v2370, 1.0
        %v2373 = vmul.f32 %v2371, 1.6732632
        %v2374 = vmul.f32 %v2372, 1.6732632
        %v2375 = vsel %vm2365, %v2363, %v2373
        %v2376 = vsel %vm2366, %v2364, %v2374
        %v2377 = vmul.f32 %v2375, 1.050701
        %v2378 = vmul.f32 %v2376, 1.050701
        %2379 = vst [vmem:[%s271] sm:$0xff] %v2377
        %2380 = vst [vmem:[%s271 + $0x8] sm:$0xff] %v2378
        %s2381 = sand.u32 %s181, 1
        %s2382 = scalar_lea.sflag [#allocation3], %s2381
        %s2383 = sand.u32 %s181, 1
        %s2384 = smul.addr %s2383, 16
        %s2385 = scalar_lea.vmem [#allocation2], %s2384
        // Predicated region
        $region49: #{tpu_custom_call.1} parent=47 // pred_check
          %p2386 = pneg %p191
        $region50: #{tpu_custom_call.1} parent=47 // pred_check_branch
          %2388 = sbr.rel (%p2386) target = $region52
        $region51: #{tpu_custom_call.1} parent=47 // pred_region
          %s2390 = ssub.s32 256, 256
          %2391 = vsyncadd %s2382, %s2390
          %s2392 = smul.addr %s21, 2
          %s2393 = smul.addr %s2392, 128
          %s2394 = scalar_lea.hbm %s7, %s2393
          %s2396 = sshll.u32 %s2385, 4
          %s2397 = int_to_ptr.vmem [resolvable:$true] %s2396
          %2399 = dma.vmem_to_hbm [thread:$0]  %s2397, 256, %s2394, %s2382
        $region52: #{tpu_custom_call.1} parent=47 // pred_fallthru
          _
      $region48: #{tpu_custom_call.1} parent=5 // pred_fallthru
        _
      %p2400 = scmp.le.s32.totalorder 2, %s16
      // Predicated region
      $region53: #{tpu_custom_call.1} parent=5 // pred_check
        %p2401 = pneg %p2400
      $region54: #{tpu_custom_call.1} parent=5 // pred_check_branch
        %2403 = sbr.rel (%p2401) target = $region56
      $region55: #{tpu_custom_call.1} parent=5 // pred_region
        %s2404 = ssub.s32 %s16, 2
        // Predicated region
        $region57: #{tpu_custom_call.1} parent=55 // pred_check
          %p2405 = pneg %p197
        $region58: #{tpu_custom_call.1} parent=55 // pred_check_branch
          %2407 = sbr.rel (%p2405) target = $region60
        $region59: #{tpu_custom_call.1} parent=55 // pred_region
          %s2408 = sand.u32 %s182, 1
          %s2409 = scalar_lea.sflag [#allocation3], %s2408
          %s2410 = sand.u32 %s182, 1
          %s2411 = smul.addr %s2410, 16
          %s2412 = scalar_lea.vmem [#allocation2], %s2411
          %2413 = dma.done %s2409, 256
        $region60: #{tpu_custom_call.1} parent=55 // pred_fallthru
          _
      $region56: #{tpu_custom_call.1} parent=5 // pred_fallthru
        _
    $region6: #{tpu_custom_call.1} parent=1 // loop_footer
      %s20 = sadd.s32 1, %s16
    $region7: #{tpu_custom_call.1} parent=1 // loop_footer_branch
      %15 = sbr.rel target = $region3
    $region8: #{tpu_custom_call.1} parent=1 // loop_exit
      _
    %2414 = vsyncpa [#allocation3], 1
    %s2415 = scalar_lea.sflag [#allocation3], 1
    %2416 = vsyncpa %s2415, 1

</llo_original>
